<compile_context>
chip_gen: v7x
topology: tpu7x:2x2x1
jax: 0.10.0
libtpu: 0.0.40
codegen_flags: <defaults>
</compile_context>

<pallas_src>
import functools

import jax
import jax.numpy as jnp
from jax.experimental import pallas as pl
from jax.experimental.pallas import tpu as pltpu

IN_FEATURES = 2048        # channels fixed by fc1/fc2
OUT1 = 2 * 17             # fc1
OUT2 = 17                 # fc2
OUT_PAD = 128             # lane-dense padded fused output width


def _round_up(x, m):
    return ((x + m - 1) // m) * m


def _vmem_capacity_bytes():
    """Physical VMEM per TensorCore (128 MiB v5e/v6e, 64 MiB v7x).  Falls back
    to the smallest current generation if the query API is unavailable."""
    try:
        return int(pltpu.get_tpu_info().vmem_capacity_bytes)
    except Exception:
        return 64 * 1024 * 1024


def _feat2pose_kernel(inv_hw, feat_ref, w_ref, b_ref, o_ref, acc_ref):
    """feat_ref: (TM, THW, C) bf16/f32 channels-last tile,
    w_ref: (C, 128) f32, b_ref: (1, 128) f32, o_ref: (TM, 128) f32,
    acc_ref: (TM, C) f32 pooled-sum accumulator (resident across the HW axis)."""
    h = pl.program_id(1)

    @pl.when(h == 0)
    def _():
        acc_ref[...] = jnp.zeros_like(acc_ref)

    # Spatial partial sum.  Channels sit on the lane axis, so this is a sublane
    # reduction: plain VPU adds plus a tiny in-vreg finish (no XLU rotate tree).
    acc_ref[...] += feat_ref[...].astype(jnp.float32).sum(axis=1)

    @pl.when(h == pl.num_programs(1) - 1)
    def _():
        # Fused fc1+fc2 head: f32 pooled activations x f32 weights, f32 acc.
        out = jnp.dot(acc_ref[...], w_ref[...],
                      preferred_element_type=jnp.float32)        # (TM, 128)
        # Apply the 1/HW mean scale to the small (TM,128) result, not to the
        # (TM,2048) pooled tensor (16x fewer multiplies).
        o_ref[...] = (out * inv_hw + b_ref[...]).astype(o_ref.dtype)


def prepare_params(w1, b1, w2, b2):
    """One-time weight prep: transpose + concat + zero-pad to a lane-dense
    (2048, 128) f32 weight and (1, 128) f32 bias (f32 kept for exactness;
    the head matmul is negligible)."""
    C = w1.shape[1]
    w_fused = jnp.zeros((C, OUT_PAD), jnp.float32)
    w_fused = w_fused.at[:, :OUT1].set(w1.T.astype(jnp.float32))
    w_fused = w_fused.at[:, OUT1:OUT1 + OUT2].set(w2.T.astype(jnp.float32))
    b_fused = jnp.zeros((1, OUT_PAD), jnp.float32)
    b_fused = b_fused.at[0, :OUT1].set(b1.astype(jnp.float32))
    b_fused = b_fused.at[0, OUT1:OUT1 + OUT2].set(b2.astype(jnp.float32))
    return w_fused, b_fused


def _row_bytes(thw, itemsize):
    """VMEM bytes of one (THW, C) channels-last feature row, including sublane
    padding of the THW axis (C=2048 is already lane dense)."""
    sublane_pack = {4: 8, 2: 16, 1: 32}.get(itemsize, 8)
    return _round_up(thw, sublane_pack) * IN_FEATURES * itemsize


def _pick_tiles(B, HW, itemsize):
    """Pick (TM, THW, vmem_cap): the biggest feature tile that double-buffers
    in this generation's VMEM, with >=2 batch grid steps when B allows it
    (v7x megacore) and an optional spatial split for very large H*W."""
    cap = _vmem_capacity_bytes()
    headroom = 12 * 1024 * 1024          # fused weights (x2 bufs), bias, output,
                                         # pooled-sum scratch, compiler scratch
    per_buf = max(2 * 1024 * 1024, (cap - headroom) // 2)   # per feature buffer

    # Spatial tile: full H*W unless even a minimal batch tile would not fit, in
    # which case split H*W into a multiple-of-8 divisor (keeps the (8,128) rule
    # and, because it divides HW exactly, keeps padding out of the sum).
    min_rows = min(8, B)
    thw = HW
    if _row_bytes(HW, itemsize) * min_rows > per_buf:
        for cand in range(8, HW, 8):
            if HW % cand == 0 and _row_bytes(cand, itemsize) * min_rows <= per_buf:
                thw = cand
    rb = _row_bytes(thw, itemsize)

    tm = max(1, per_buf // rb)
    if tm >= B:
        tm = B                            # single full-extent batch block
    else:
        tm = max(8, (tm // 8) * 8)        # (TM,128) output block: sublane %8
    if B >= 16:
        # Keep >=2 batch grid steps so the "parallel" axis has work to shard
        # across v7x's two TensorCores (no-op on v5e/v6e).
        tm = min(tm, max(8, (((B + 1) // 2) // 8) * 8))
    tm = min(tm, B)
    return tm, thw, cap


def feat2pose_forward(feature, w_fused, b_fused, *, channels_last=False):
    """Forward pass of Feat2pose.

    feature: (B, C, H, W) module-native NCHW (any float dtype), or
             (B, H, W, C) when channels_last=True (preferred: no relayout pass;
             bf16 recommended at the producer).
    Returns (fc1_out (B, 34) f32, fc2_out (B, 17) f32).
    """
    if channels_last:
        B, H, W, C = feature.shape
        feat = feature
    else:
        B, C, H, W = feature.shape
        # Layout plumbing: one fused transpose+cast pass so the kernel sees a
        # lane-dense channels-last bf16 tile (halved HBM read + VPU pooling).
        # Ideally the upstream producer emits NHWC bf16 and channels_last=True.
        feat = jnp.transpose(feature, (0, 2, 3, 1)).astype(jnp.bfloat16)
    assert C == IN_FEATURES
    HW = H * W
    feat = feat.reshape(B, HW, C)                 # free reshape (H,W contiguous)

    tm, thw, vmem_cap = _pick_tiles(B, HW, feat.dtype.itemsize)
    grid = (pl.cdiv(B, tm), HW // thw)

    kernel = functools.partial(_feat2pose_kernel, float(1.0 / HW))
    out = pl.pallas_call(
        kernel,
        out_shape=jax.ShapeDtypeStruct((B, OUT_PAD), jnp.float32),
        grid=grid,
        in_specs=[
            pl.BlockSpec((tm, thw, C), lambda i, h: (i, h, 0)),   # feature tile
            pl.BlockSpec((C, OUT_PAD), lambda i, h: (0, 0)),      # resident weight
            pl.BlockSpec((1, OUT_PAD), lambda i, h: (0, 0)),      # resident bias
        ],
        out_specs=pl.BlockSpec((tm, OUT_PAD), lambda i, h: (i, 0)),
        scratch_shapes=[pltpu.VMEM((tm, IN_FEATURES), jnp.float32)],  # pooled sum
        compiler_params=pltpu.CompilerParams(
            dimension_semantics=("parallel", "arbitrary"),
            vmem_limit_bytes=int(vmem_cap)),
    )(feat, w_fused, b_fused)

    x1 = out[:, :OUT1]                 # (B, 34)
    x2 = out[:, OUT1:OUT1 + OUT2]      # (B, 17)
    return x1, x2


def init_params(key):
    """Deterministic init mimicking nn.Linear's kaiming-uniform bounds."""
    k1, k2, k3, k4 = jax.random.split(key, 4)
    bound = 1.0 / (IN_FEATURES ** 0.5)
    w1 = jax.random.uniform(k1, (OUT1, IN_FEATURES), jnp.float32, -bound, bound)
    b1 = jax.random.uniform(k2, (OUT1,), jnp.float32, -bound, bound)
    w2 = jax.random.uniform(k3, (OUT2, IN_FEATURES), jnp.float32, -bound, bound)
    b2 = jax.random.uniform(k4, (OUT2,), jnp.float32, -bound, bound)
    return w1, b1, w2, b2


if __name__ == "__main__":
    key = jax.random.PRNGKey(0)
    kx, kp = jax.random.split(key)

    B, H, W = 2, 8, 8
    # Module-native NCHW input (B, 2048, H, W).
    feature = jax.random.normal(kx, (B, IN_FEATURES, H, W), dtype=jnp.float32)
    w1, b1, w2, b2 = init_params(kp)

    # One-time param prep (transpose / fuse / pad), then the fused kernel.
    w_fused, b_fused = prepare_params(w1, b1, w2, b2)
    out_fc1, out_fc2 = feat2pose_forward(feature, w_fused, b_fused)
    jax.block_until_ready((out_fc1, out_fc2))

    # Reference in f32 math over the same bf16-quantized features the kernel reads.
    feat_q = feature.astype(jnp.bfloat16).astype(jnp.float32)
    pooled = feat_q.mean(axis=(2, 3))                     # (B, 2048)
    ref1 = pooled @ w1.T + b1
    ref2 = pooled @ w2.T + b2
    assert out_fc1.shape == (B, OUT1) and out_fc2.shape == (B, OUT2)
    assert jnp.allclose(out_fc1, ref1, atol=1e-2, rtol=1e-2)
    assert jnp.allclose(out_fc2, ref2, atol=1e-2, rtol=1e-2)

    print("KERNEL_OK")
</pallas_src>

<mosaic_0001>
module attributes {stable_mosaic.version = 11 : i64} {
  func.func @_feat2pose_kernel(%arg0: i32, %arg1: i32, %arg2: memref<2x64x2048xbf16, #tpu.memory_space<vmem>>, %arg3: memref<2048x128xf32, #tpu.memory_space<vmem>>, %arg4: memref<1x128xf32, #tpu.memory_space<vmem>>, %arg5: memref<2x128xf32, #tpu.memory_space<vmem>>, %arg6: memref<2x2048xf32, #tpu.memory_space<vmem>>) attributes {dimension_semantics = [#tpu.dimension_semantics<parallel>, #tpu.dimension_semantics<arbitrary>], iteration_bounds = array<i64: 1, 1>, scalar_prefetch = 0 : i64, scratch_operands = 1 : i64, tpu.core_type = #tpu.core_type<tc>, window_params = [{transform_indices = @transform_0, window_bounds = array<i64: 2, 64, 2048>}, {pipeline_mode = #tpu.pipeline_mode<synchronous>, transform_indices = @transform_1, window_bounds = array<i64: 2048, 128>}, {pipeline_mode = #tpu.pipeline_mode<synchronous>, transform_indices = @transform_2, window_bounds = array<i64: 1, 128>}, {transform_indices = @transform_3, window_bounds = array<i64: 2, 128>}]} {
    %c0_i32 = arith.constant 0 : i32
    %0 = arith.cmpi eq, %arg1, %c0_i32 : i32
    %1 = arith.extui %0 : i1 to i32
    %c0_i32_0 = arith.constant 0 : i32
    %2 = arith.cmpi ne, %1, %c0_i32_0 : i32
    scf.if %2 {
      %cst_9 = arith.constant 0.000000e+00 : f32
      %12 = vector.broadcast %cst_9 : f32 to vector<2x2048xf32>
      %c0_10 = arith.constant 0 : index
      %c0_11 = arith.constant 0 : index
      %13 = vector.load %arg6[%c0_10, %c0_11] : memref<2x2048xf32, #tpu.memory_space<vmem>>, vector<2x2048xf32>
      tpu.vector_store %arg6[%c0_10, %c0_11], %12 {strides = array<i32>} : memref<2x2048xf32, #tpu.memory_space<vmem>>, vector<2x2048xf32>,
    } else {
    }
    %c0 = arith.constant 0 : index
    %c0_1 = arith.constant 0 : index
    %3 = vector.load %arg6[%c0, %c0_1] : memref<2x2048xf32, #tpu.memory_space<vmem>>, vector<2x2048xf32>
    %c0_2 = arith.constant 0 : index
    %c0_3 = arith.constant 0 : index
    %c0_4 = arith.constant 0 : index
    %4 = vector.load %arg2[%c0_2, %c0_3, %c0_4] : memref<2x64x2048xbf16, #tpu.memory_space<vmem>>, vector<2x64x2048xbf16>
    %5 = arith.extf %4 : vector<2x64x2048xbf16> to vector<2x64x2048xf32>
    %cst = arith.constant dense<0.000000e+00> : vector<2x2048xf32>
    %6 = vector.multi_reduction <add>, %5, %cst [1] : vector<2x64x2048xf32> to vector<2x2048xf32>
    %7 = arith.addf %3, %6 : vector<2x2048xf32>
    %c0_5 = arith.constant 0 : index
    %c0_6 = arith.constant 0 : index
    %8 = vector.load %arg6[%c0_5, %c0_6] : memref<2x2048xf32, #tpu.memory_space<vmem>>, vector<2x2048xf32>
    tpu.vector_store %arg6[%c0_5, %c0_6], %7 {strides = array<i32>} : memref<2x2048xf32, #tpu.memory_space<vmem>>, vector<2x2048xf32>,
    %c0_i32_7 = arith.constant 0 : i32
    %9 = arith.cmpi eq, %arg1, %c0_i32_7 : i32
    %10 = arith.extui %9 : i1 to i32
    %c0_i32_8 = arith.constant 0 : i32
    %11 = arith.cmpi ne, %10, %c0_i32_8 : i32
    scf.if %11 {
      %c0_9 = arith.constant 0 : index
      %c0_10 = arith.constant 0 : index
      %12 = vector.load %arg6[%c0_9, %c0_10] : memref<2x2048xf32, #tpu.memory_space<vmem>>, vector<2x2048xf32>
      %c0_11 = arith.constant 0 : index
      %c0_12 = arith.constant 0 : index
      %13 = vector.load %arg3[%c0_11, %c0_12] : memref<2048x128xf32, #tpu.memory_space<vmem>>, vector<2048x128xf32>
      %cst_13 = arith.constant dense<0.000000e+00> : vector<2x128xf32>
      %14 = tpu.matmul %12, %13, %cst_13 {dimension_numbers = #tpu.dot_dimension_numbers<[1], [0], [0], [1], [0, 0, 1, 1], [], []>} : vector<2x2048xf32>, vector<2048x128xf32>, vector<2x128xf32> -> vector<2x128xf32>
      %cst_14 = arith.constant 1.562500e-02 : f32
      %15 = vector.broadcast %cst_14 : f32 to vector<2x128xf32>
      %16 = arith.mulf %14, %15 : vector<2x128xf32>
      %c0_15 = arith.constant 0 : index
      %c0_16 = arith.constant 0 : index
      %17 = vector.load %arg4[%c0_15, %c0_16] : memref<1x128xf32, #tpu.memory_space<vmem>>, vector<1x128xf32>
      %18 = vector.broadcast %17 : vector<1x128xf32> to vector<2x128xf32>
      %19 = arith.addf %16, %18 : vector<2x128xf32>
      %c0_17 = arith.constant 0 : index
      %c0_18 = arith.constant 0 : index
      %20 = vector.load %arg5[%c0_17, %c0_18] : memref<2x128xf32, #tpu.memory_space<vmem>>, vector<2x128xf32>
      tpu.vector_store %arg5[%c0_17, %c0_18], %19 {strides = array<i32>} : memref<2x128xf32, #tpu.memory_space<vmem>>, vector<2x128xf32>,
    } else {
    }
    return
  }
  func.func @transform_0(%arg0: i32, %arg1: i32) -> (i32, i32, i32) {
    %c0_i32 = arith.constant 0 : i32
    %c0_i32_0 = arith.constant 0 : i32
    return %arg0, %arg1, %c0_i32 : i32, i32, i32
  }
  func.func @transform_1(%arg0: i32, %arg1: i32) -> (i32, i32) {
    %c0_i32 = arith.constant 0 : i32
    %c0_i32_0 = arith.constant 0 : i32
    %c0_i32_1 = arith.constant 0 : i32
    return %c0_i32, %c0_i32_0 : i32, i32
  }
  func.func @transform_2(%arg0: i32, %arg1: i32) -> (i32, i32) {
    %c0_i32 = arith.constant 0 : i32
    %c0_i32_0 = arith.constant 0 : i32
    %c0_i32_1 = arith.constant 0 : i32
    return %c0_i32, %c0_i32_0 : i32, i32
  }
  func.func @transform_3(%arg0: i32, %arg1: i32) -> (i32, i32) {
    %c0_i32 = arith.constant 0 : i32
    %c0_i32_0 = arith.constant 0 : i32
    return %arg0, %c0_i32 : i32, i32
  }
}

</mosaic_0001>

<llo_original>
// kernel: tpu_custom_call.1
$region0: #{tpu_custom_call.1}
  #allocation0 [shape = 'u32[]', space=smem, size = 0x4, offset = 0x4, fixed_abs, tag = 'smem constant byte address 0x4 - core index']
  #allocation1 [shape = 'u32[144,128]{1,0:T(1,128)}', space=vmem, size = 0x12000, scoped, tag = 'internal scratch']
  #allocation2 [shape = 'f32[2,2048]{1,0:T(2,128)}', space=vmem, size = 0x4000, scoped, tag = 'scratch operand']
  %s0 = inlined_call_operand.hbm [shape: bf16[2,64,2048], index: 0, kind: input, shape index: {}]
  %s1 = inlined_call_operand.hbm [shape: f32[2048,128], index: 1, kind: input, shape index: {}]
  %s2 = inlined_call_operand.hbm [shape: f32[1,128], index: 2, kind: input, shape index: {}]
  %s3 = inlined_call_operand.hbm [shape: f32[2,128], index: 3, kind: output, shape index: {}]
  %s4 = sld [smem:[#allocation0]]
  $region42: #{tpu_custom_call.1} parent=0
    _
  %s6 = ssub.s32 1, %s4
  %s7 = scalar_select 0, %s6, %s4
  $region1: #{tpu_custom_call.1} parent=0
    #allocation3 [shape = 'u8[524288]{0}', space=vmem, size = 0x80000, scoped, tag = 'input window, operand 0, single buffered']
    #allocation4 [shape = 's32[1]{0}', space=sflag, size = 0x4, scoped, tag = 'scoped memory for tpu_custom_call.1']
    #allocation5 [shape = 's32[1]{0}', space=sflag, size = 0x4, scoped, tag = 'scoped memory for tpu_custom_call.1']
    #allocation6 [shape = 'u8[1048576]{0}', space=vmem, size = 0x100000, scoped, tag = 'input window, operand 1, single buffered']
    #allocation7 [shape = 's32[1]{0}', space=sflag, size = 0x4, scoped, tag = 'scoped memory for tpu_custom_call.1']
    #allocation8 [shape = 'u8[512]{0}', space=vmem, size = 0x400, scoped, tag = 'input window, operand 2, single buffered']
    #allocation9 [shape = 'u8[1024]{0}', space=vmem, size = 0x400, scoped, tag = 'output window, operand 0, single buffered']
    %8 = vsyncpa [#allocation4], 0
    %9 = vsyncpa [#allocation7], 0
    %10 = vsyncpa [#allocation5], 0
    // Predicated region
    $region2: #{tpu_custom_call.1} parent=1 // pred_check
      _
    $region3: #{tpu_custom_call.1} parent=1 // pred_check_branch
      %12 = sbr.rel (0) target = $region5
    $region4: #{tpu_custom_call.1} parent=1 // pred_region
      %s14 = ssub.s32 16384, 16384
      %15 = vsyncadd [#allocation4], %s14
      %s16 = sshll.u32 [#allocation3], 4
      %s17 = int_to_ptr.vmem [resolvable:$true] %s16
      %22 = dma.hbm_to_vmem [thread:$0]  %s0, 16384, %s17, [#allocation4], 1024, 1024, 64
    $region5: #{tpu_custom_call.1} parent=1 // pred_fallthru
      _
    // Predicated region
    $region6: #{tpu_custom_call.1} parent=1 // pred_check
      _
    $region7: #{tpu_custom_call.1} parent=1 // pred_check_branch
      %24 = sbr.rel (0) target = $region9
    $region8: #{tpu_custom_call.1} parent=1 // pred_region
      %s26 = ssub.s32 32768, 32768
      %27 = vsyncadd [#allocation7], %s26
      %s28 = sshll.u32 [#allocation6], 4
      %s29 = int_to_ptr.vmem [resolvable:$true] %s28
      %34 = dma.hbm_to_vmem [thread:$0]  %s1, 32768, %s29, [#allocation7], 128, 128, 8
    $region9: #{tpu_custom_call.1} parent=1 // pred_fallthru
      _
    // Predicated region
    $region10: #{tpu_custom_call.1} parent=1 // pred_check
      _
    $region11: #{tpu_custom_call.1} parent=1 // pred_check_branch
      %36 = sbr.rel (0) target = $region13
    $region12: #{tpu_custom_call.1} parent=1 // pred_region
      %s38 = ssub.s32 16, 16
      %39 = vsyncadd [#allocation7], %s38
      %s41 = sshll.u32 [#allocation8], 4
      %s42 = int_to_ptr.vmem [resolvable:$true] %s41
      %44 = dma.hbm_to_vmem [thread:$0]  %s2, 16, %s42, [#allocation7]
    $region13: #{tpu_custom_call.1} parent=1 // pred_fallthru
      _
    // Predicated region
    $region14: #{tpu_custom_call.1} parent=1 // pred_check
      _
    $region15: #{tpu_custom_call.1} parent=1 // pred_check_branch
      %46 = sbr.rel (0) target = $region17
    $region16: #{tpu_custom_call.1} parent=1 // pred_region
      %47 = dma.done [#allocation4], 16384
    $region17: #{tpu_custom_call.1} parent=1 // pred_fallthru
      _
    // Predicated region
    $region18: #{tpu_custom_call.1} parent=1 // pred_check
      _
    $region19: #{tpu_custom_call.1} parent=1 // pred_check_branch
      %49 = sbr.rel (0) target = $region21
    $region20: #{tpu_custom_call.1} parent=1 // pred_region
      %50 = dma.done [#allocation7], 32768
    $region21: #{tpu_custom_call.1} parent=1 // pred_fallthru
      _
    // Predicated region
    $region22: #{tpu_custom_call.1} parent=1 // pred_check
      _
    $region23: #{tpu_custom_call.1} parent=1 // pred_check_branch
      %52 = sbr.rel (0) target = $region25
    $region24: #{tpu_custom_call.1} parent=1 // pred_region
      %53 = dma.done [#allocation7], 16
    $region25: #{tpu_custom_call.1} parent=1 // pred_fallthru
      _
    %p54 = scmp.eq.s32.totalorder 0, 0
    // Predicated region
    $region26: #{tpu_custom_call.1} parent=1 // pred_check
      %p55 = pneg %p54
    $region27: #{tpu_custom_call.1} parent=1 // pred_check_branch
      %57 = sbr.rel (%p55) target = $region29
    $region28: #{tpu_custom_call.1} parent=1 // pred_region
      %58 = vst [vmem:[#allocation2] sm:$0xff] 0.0
      %59 = vst [vmem:[#allocation2 + $0x8] sm:$0xff] 0.0
      %60 = vst [vmem:[#allocation2 + $0x10] sm:$0xff] 0.0
      %61 = vst [vmem:[#allocation2 + $0x18] sm:$0xff] 0.0
    $region29: #{tpu_custom_call.1} parent=1 // pred_fallthru
      _
    %v62 = vld [vmem:[#allocation2] sm:$0xff]
    %v63 = vld [vmem:[#allocation2 + $0x8] sm:$0xff]
    %v64 = vld [vmem:[#allocation2 + $0x10] sm:$0xff]
    %v65 = vld [vmem:[#allocation2 + $0x18] sm:$0xff]
    %v66 = vld [vmem:[#allocation3] sm:$0xff]
    %v67 = vld [vmem:[#allocation3 + $0x8] sm:$0xff]
    %v68 = vld [vmem:[#allocation3 + $0x10] sm:$0xff]
    %v69 = vld [vmem:[#allocation3 + $0x18] sm:$0xff]
    %v70 = vld [vmem:[#allocation3 + $0x20] sm:$0xff]
    %v71 = vld [vmem:[#allocation3 + $0x28] sm:$0xff]
    %v72 = vld [vmem:[#allocation3 + $0x30] sm:$0xff]
    %v73 = vld [vmem:[#allocation3 + $0x38] sm:$0xff]
    %v74 = vld [vmem:[#allocation3 + $0x40] sm:$0xff]
    %v75 = vld [vmem:[#allocation3 + $0x48] sm:$0xff]
    %v76 = vld [vmem:[#allocation3 + $0x50] sm:$0xff]
    %v77 = vld [vmem:[#allocation3 + $0x58] sm:$0xff]
    %v78 = vld [vmem:[#allocation3 + $0x60] sm:$0xff]
    %v79 = vld [vmem:[#allocation3 + $0x68] sm:$0xff]
    %v80 = vld [vmem:[#allocation3 + $0x70] sm:$0xff]
    %v81 = vld [vmem:[#allocation3 + $0x78] sm:$0xff]
    %v82 = vld [vmem:[#allocation3 + $0x80] sm:$0xff]
    %v83 = vld [vmem:[#allocation3 + $0x88] sm:$0xff]
    %v84 = vld [vmem:[#allocation3 + $0x90] sm:$0xff]
    %v85 = vld [vmem:[#allocation3 + $0x98] sm:$0xff]
    %v86 = vld [vmem:[#allocation3 + $0xa0] sm:$0xff]
    %v87 = vld [vmem:[#allocation3 + $0xa8] sm:$0xff]
    %v88 = vld [vmem:[#allocation3 + $0xb0] sm:$0xff]
    %v89 = vld [vmem:[#allocation3 + $0xb8] sm:$0xff]
    %v90 = vld [vmem:[#allocation3 + $0xc0] sm:$0xff]
    %v91 = vld [vmem:[#allocation3 + $0xc8] sm:$0xff]
    %v92 = vld [vmem:[#allocation3 + $0xd0] sm:$0xff]
    %v93 = vld [vmem:[#allocation3 + $0xd8] sm:$0xff]
    %v94 = vld [vmem:[#allocation3 + $0xe0] sm:$0xff]
    %v95 = vld [vmem:[#allocation3 + $0xe8] sm:$0xff]
    %v96 = vld [vmem:[#allocation3 + $0xf0] sm:$0xff]
    %v97 = vld [vmem:[#allocation3 + $0xf8] sm:$0xff]
    %v98 = vld [vmem:[#allocation3 + $0x100] sm:$0xff]
    %v99 = vld [vmem:[#allocation3 + $0x108] sm:$0xff]
    %v100 = vld [vmem:[#allocation3 + $0x110] sm:$0xff]
    %v101 = vld [vmem:[#allocation3 + $0x118] sm:$0xff]
    %v102 = vld [vmem:[#allocation3 + $0x120] sm:$0xff]
    %v103 = vld [vmem:[#allocation3 + $0x128] sm:$0xff]
    %v104 = vld [vmem:[#allocation3 + $0x130] sm:$0xff]
    %v105 = vld [vmem:[#allocation3 + $0x138] sm:$0xff]
    %v106 = vld [vmem:[#allocation3 + $0x140] sm:$0xff]
    %v107 = vld [vmem:[#allocation3 + $0x148] sm:$0xff]
    %v108 = vld [vmem:[#allocation3 + $0x150] sm:$0xff]
    %v109 = vld [vmem:[#allocation3 + $0x158] sm:$0xff]
    %v110 = vld [vmem:[#allocation3 + $0x160] sm:$0xff]
    %v111 = vld [vmem:[#allocation3 + $0x168] sm:$0xff]
    %v112 = vld [vmem:[#allocation3 + $0x170] sm:$0xff]
    %v113 = vld [vmem:[#allocation3 + $0x178] sm:$0xff]
    %v114 = vld [vmem:[#allocation3 + $0x180] sm:$0xff]
    %v115 = vld [vmem:[#allocation3 + $0x188] sm:$0xff]
    %v116 = vld [vmem:[#allocation3 + $0x190] sm:$0xff]
    %v117 = vld [vmem:[#allocation3 + $0x198] sm:$0xff]
    %v118 = vld [vmem:[#allocation3 + $0x1a0] sm:$0xff]
    %v119 = vld [vmem:[#allocation3 + $0x1a8] sm:$0xff]
    %v120 = vld [vmem:[#allocation3 + $0x1b0] sm:$0xff]
    %v121 = vld [vmem:[#allocation3 + $0x1b8] sm:$0xff]
    %v122 = vld [vmem:[#allocation3 + $0x1c0] sm:$0xff]
    %v123 = vld [vmem:[#allocation3 + $0x1c8] sm:$0xff]
    %v124 = vld [vmem:[#allocation3 + $0x1d0] sm:$0xff]
    %v125 = vld [vmem:[#allocation3 + $0x1d8] sm:$0xff]
    %v126 = vld [vmem:[#allocation3 + $0x1e0] sm:$0xff]
    %v127 = vld [vmem:[#allocation3 + $0x1e8] sm:$0xff]
    %v128 = vld [vmem:[#allocation3 + $0x1f0] sm:$0xff]
    %v129 = vld [vmem:[#allocation3 + $0x1f8] sm:$0xff]
    %v130 = vld [vmem:[#allocation3 + $0x200] sm:$0xff]
    %v131 = vld [vmem:[#allocation3 + $0x208] sm:$0xff]
    %v132 = vld [vmem:[#allocation3 + $0x210] sm:$0xff]
    %v133 = vld [vmem:[#allocation3 + $0x218] sm:$0xff]
    %v134 = vld [vmem:[#allocation3 + $0x220] sm:$0xff]
    %v135 = vld [vmem:[#allocation3 + $0x228] sm:$0xff]
    %v136 = vld [vmem:[#allocation3 + $0x230] sm:$0xff]
    %v137 = vld [vmem:[#allocation3 + $0x238] sm:$0xff]
    %v138 = vld [vmem:[#allocation3 + $0x240] sm:$0xff]
    %v139 = vld [vmem:[#allocation3 + $0x248] sm:$0xff]
    %v140 = vld [vmem:[#allocation3 + $0x250] sm:$0xff]
    %v141 = vld [vmem:[#allocation3 + $0x258] sm:$0xff]
    %v142 = vld [vmem:[#allocation3 + $0x260] sm:$0xff]
    %v143 = vld [vmem:[#allocation3 + $0x268] sm:$0xff]
    %v144 = vld [vmem:[#allocation3 + $0x270] sm:$0xff]
    %v145 = vld [vmem:[#allocation3 + $0x278] sm:$0xff]
    %v146 = vld [vmem:[#allocation3 + $0x280] sm:$0xff]
    %v147 = vld [vmem:[#allocation3 + $0x288] sm:$0xff]
    %v148 = vld [vmem:[#allocation3 + $0x290] sm:$0xff]
    %v149 = vld [vmem:[#allocation3 + $0x298] sm:$0xff]
    %v150 = vld [vmem:[#allocation3 + $0x2a0] sm:$0xff]
    %v151 = vld [vmem:[#allocation3 + $0x2a8] sm:$0xff]
    %v152 = vld [vmem:[#allocation3 + $0x2b0] sm:$0xff]
    %v153 = vld [vmem:[#allocation3 + $0x2b8] sm:$0xff]
    %v154 = vld [vmem:[#allocation3 + $0x2c0] sm:$0xff]
    %v155 = vld [vmem:[#allocation3 + $0x2c8] sm:$0xff]
    %v156 = vld [vmem:[#allocation3 + $0x2d0] sm:$0xff]
    %v157 = vld [vmem:[#allocation3 + $0x2d8] sm:$0xff]
    %v158 = vld [vmem:[#allocation3 + $0x2e0] sm:$0xff]
    %v159 = vld [vmem:[#allocation3 + $0x2e8] sm:$0xff]
    %v160 = vld [vmem:[#allocation3 + $0x2f0] sm:$0xff]
    %v161 = vld [vmem:[#allocation3 + $0x2f8] sm:$0xff]
    %v162 = vld [vmem:[#allocation3 + $0x300] sm:$0xff]
    %v163 = vld [vmem:[#allocation3 + $0x308] sm:$0xff]
    %v164 = vld [vmem:[#allocation3 + $0x310] sm:$0xff]
    %v165 = vld [vmem:[#allocation3 + $0x318] sm:$0xff]
    %v166 = vld [vmem:[#allocation3 + $0x320] sm:$0xff]
    %v167 = vld [vmem:[#allocation3 + $0x328] sm:$0xff]
    %v168 = vld [vmem:[#allocation3 + $0x330] sm:$0xff]
    %v169 = vld [vmem:[#allocation3 + $0x338] sm:$0xff]
    %v170 = vld [vmem:[#allocation3 + $0x340] sm:$0xff]
    %v171 = vld [vmem:[#allocation3 + $0x348] sm:$0xff]
    %v172 = vld [vmem:[#allocation3 + $0x350] sm:$0xff]
    %v173 = vld [vmem:[#allocation3 + $0x358] sm:$0xff]
    %v174 = vld [vmem:[#allocation3 + $0x360] sm:$0xff]
    %v175 = vld [vmem:[#allocation3 + $0x368] sm:$0xff]
    %v176 = vld [vmem:[#allocation3 + $0x370] sm:$0xff]
    %v177 = vld [vmem:[#allocation3 + $0x378] sm:$0xff]
    %v178 = vld [vmem:[#allocation3 + $0x380] sm:$0xff]
    %v179 = vld [vmem:[#allocation3 + $0x388] sm:$0xff]
    %v180 = vld [vmem:[#allocation3 + $0x390] sm:$0xff]
    %v181 = vld [vmem:[#allocation3 + $0x398] sm:$0xff]
    %v182 = vld [vmem:[#allocation3 + $0x3a0] sm:$0xff]
    %v183 = vld [vmem:[#allocation3 + $0x3a8] sm:$0xff]
    %v184 = vld [vmem:[#allocation3 + $0x3b0] sm:$0xff]
    %v185 = vld [vmem:[#allocation3 + $0x3b8] sm:$0xff]
    %v186 = vld [vmem:[#allocation3 + $0x3c0] sm:$0xff]
    %v187 = vld [vmem:[#allocation3 + $0x3c8] sm:$0xff]
    %v188 = vld [vmem:[#allocation3 + $0x3d0] sm:$0xff]
    %v189 = vld [vmem:[#allocation3 + $0x3d8] sm:$0xff]
    %v190 = vld [vmem:[#allocation3 + $0x3e0] sm:$0xff]
    %v191 = vld [vmem:[#allocation3 + $0x3e8] sm:$0xff]
    %v192 = vld [vmem:[#allocation3 + $0x3f0] sm:$0xff]
    %v193 = vld [vmem:[#allocation3 + $0x3f8] sm:$0xff]
    %v194 = vunpack.c.l.bf16 %v66
    %v195 = vunpack.c.h.bf16 %v66
    %v196 = vunpack.c.l.bf16 %v67
    %v197 = vunpack.c.h.bf16 %v67
    %v198 = vunpack.c.l.bf16 %v68
    %v199 = vunpack.c.h.bf16 %v68
    %v200 = vunpack.c.l.bf16 %v69
    %v201 = vunpack.c.h.bf16 %v69
    %v202 = vunpack.c.l.bf16 %v70
    %v203 = vunpack.c.h.bf16 %v70
    %v204 = vunpack.c.l.bf16 %v71
    %v205 = vunpack.c.h.bf16 %v71
    %v206 = vunpack.c.l.bf16 %v72
    %v207 = vunpack.c.h.bf16 %v72
    %v208 = vunpack.c.l.bf16 %v73
    %v209 = vunpack.c.h.bf16 %v73
    %v210 = vunpack.c.l.bf16 %v74
    %v211 = vunpack.c.h.bf16 %v74
    %v212 = vunpack.c.l.bf16 %v75
    %v213 = vunpack.c.h.bf16 %v75
    %v214 = vunpack.c.l.bf16 %v76
    %v215 = vunpack.c.h.bf16 %v76
    %v216 = vunpack.c.l.bf16 %v77
    %v217 = vunpack.c.h.bf16 %v77
    %v218 = vunpack.c.l.bf16 %v78
    %v219 = vunpack.c.h.bf16 %v78
    %v220 = vunpack.c.l.bf16 %v79
    %v221 = vunpack.c.h.bf16 %v79
    %v222 = vunpack.c.l.bf16 %v80
    %v223 = vunpack.c.h.bf16 %v80
    %v224 = vunpack.c.l.bf16 %v81
    %v225 = vunpack.c.h.bf16 %v81
    %v226 = vunpack.c.l.bf16 %v82
    %v227 = vunpack.c.h.bf16 %v82
    %v228 = vunpack.c.l.bf16 %v83
    %v229 = vunpack.c.h.bf16 %v83
    %v230 = vunpack.c.l.bf16 %v84
    %v231 = vunpack.c.h.bf16 %v84
    %v232 = vunpack.c.l.bf16 %v85
    %v233 = vunpack.c.h.bf16 %v85
    %v234 = vunpack.c.l.bf16 %v86
    %v235 = vunpack.c.h.bf16 %v86
    %v236 = vunpack.c.l.bf16 %v87
    %v237 = vunpack.c.h.bf16 %v87
    %v238 = vunpack.c.l.bf16 %v88
    %v239 = vunpack.c.h.bf16 %v88
    %v240 = vunpack.c.l.bf16 %v89
    %v241 = vunpack.c.h.bf16 %v89
    %v242 = vunpack.c.l.bf16 %v90
    %v243 = vunpack.c.h.bf16 %v90
    %v244 = vunpack.c.l.bf16 %v91
    %v245 = vunpack.c.h.bf16 %v91
    %v246 = vunpack.c.l.bf16 %v92
    %v247 = vunpack.c.h.bf16 %v92
    %v248 = vunpack.c.l.bf16 %v93
    %v249 = vunpack.c.h.bf16 %v93
    %v250 = vunpack.c.l.bf16 %v94
    %v251 = vunpack.c.h.bf16 %v94
    %v252 = vunpack.c.l.bf16 %v95
    %v253 = vunpack.c.h.bf16 %v95
    %v254 = vunpack.c.l.bf16 %v96
    %v255 = vunpack.c.h.bf16 %v96
    %v256 = vunpack.c.l.bf16 %v97
    %v257 = vunpack.c.h.bf16 %v97
    %v258 = vunpack.c.l.bf16 %v98
    %v259 = vunpack.c.h.bf16 %v98
    %v260 = vunpack.c.l.bf16 %v99
    %v261 = vunpack.c.h.bf16 %v99
    %v262 = vunpack.c.l.bf16 %v100
    %v263 = vunpack.c.h.bf16 %v100
    %v264 = vunpack.c.l.bf16 %v101
    %v265 = vunpack.c.h.bf16 %v101
    %v266 = vunpack.c.l.bf16 %v102
    %v267 = vunpack.c.h.bf16 %v102
    %v268 = vunpack.c.l.bf16 %v103
    %v269 = vunpack.c.h.bf16 %v103
    %v270 = vunpack.c.l.bf16 %v104
    %v271 = vunpack.c.h.bf16 %v104
    %v272 = vunpack.c.l.bf16 %v105
    %v273 = vunpack.c.h.bf16 %v105
    %v274 = vunpack.c.l.bf16 %v106
    %v275 = vunpack.c.h.bf16 %v106
    %v276 = vunpack.c.l.bf16 %v107
    %v277 = vunpack.c.h.bf16 %v107
    %v278 = vunpack.c.l.bf16 %v108
    %v279 = vunpack.c.h.bf16 %v108
    %v280 = vunpack.c.l.bf16 %v109
    %v281 = vunpack.c.h.bf16 %v109
    %v282 = vunpack.c.l.bf16 %v110
    %v283 = vunpack.c.h.bf16 %v110
    %v284 = vunpack.c.l.bf16 %v111
    %v285 = vunpack.c.h.bf16 %v111
    %v286 = vunpack.c.l.bf16 %v112
    %v287 = vunpack.c.h.bf16 %v112
    %v288 = vunpack.c.l.bf16 %v113
    %v289 = vunpack.c.h.bf16 %v113
    %v290 = vunpack.c.l.bf16 %v114
    %v291 = vunpack.c.h.bf16 %v114
    %v292 = vunpack.c.l.bf16 %v115
    %v293 = vunpack.c.h.bf16 %v115
    %v294 = vunpack.c.l.bf16 %v116
    %v295 = vunpack.c.h.bf16 %v116
    %v296 = vunpack.c.l.bf16 %v117
    %v297 = vunpack.c.h.bf16 %v117
    %v298 = vunpack.c.l.bf16 %v118
    %v299 = vunpack.c.h.bf16 %v118
    %v300 = vunpack.c.l.bf16 %v119
    %v301 = vunpack.c.h.bf16 %v119
    %v302 = vunpack.c.l.bf16 %v120
    %v303 = vunpack.c.h.bf16 %v120
    %v304 = vunpack.c.l.bf16 %v121
    %v305 = vunpack.c.h.bf16 %v121
    %v306 = vunpack.c.l.bf16 %v122
    %v307 = vunpack.c.h.bf16 %v122
    %v308 = vunpack.c.l.bf16 %v123
    %v309 = vunpack.c.h.bf16 %v123
    %v310 = vunpack.c.l.bf16 %v124
    %v311 = vunpack.c.h.bf16 %v124
    %v312 = vunpack.c.l.bf16 %v125
    %v313 = vunpack.c.h.bf16 %v125
    %v314 = vunpack.c.l.bf16 %v126
    %v315 = vunpack.c.h.bf16 %v126
    %v316 = vunpack.c.l.bf16 %v127
    %v317 = vunpack.c.h.bf16 %v127
    %v318 = vunpack.c.l.bf16 %v128
    %v319 = vunpack.c.h.bf16 %v128
    %v320 = vunpack.c.l.bf16 %v129
    %v321 = vunpack.c.h.bf16 %v129
    %v322 = vunpack.c.l.bf16 %v130
    %v323 = vunpack.c.h.bf16 %v130
    %v324 = vunpack.c.l.bf16 %v131
    %v325 = vunpack.c.h.bf16 %v131
    %v326 = vunpack.c.l.bf16 %v132
    %v327 = vunpack.c.h.bf16 %v132
    %v328 = vunpack.c.l.bf16 %v133
    %v329 = vunpack.c.h.bf16 %v133
    %v330 = vunpack.c.l.bf16 %v134
    %v331 = vunpack.c.h.bf16 %v134
    %v332 = vunpack.c.l.bf16 %v135
    %v333 = vunpack.c.h.bf16 %v135
    %v334 = vunpack.c.l.bf16 %v136
    %v335 = vunpack.c.h.bf16 %v136
    %v336 = vunpack.c.l.bf16 %v137
    %v337 = vunpack.c.h.bf16 %v137
    %v338 = vunpack.c.l.bf16 %v138
    %v339 = vunpack.c.h.bf16 %v138
    %v340 = vunpack.c.l.bf16 %v139
    %v341 = vunpack.c.h.bf16 %v139
    %v342 = vunpack.c.l.bf16 %v140
    %v343 = vunpack.c.h.bf16 %v140
    %v344 = vunpack.c.l.bf16 %v141
    %v345 = vunpack.c.h.bf16 %v141
    %v346 = vunpack.c.l.bf16 %v142
    %v347 = vunpack.c.h.bf16 %v142
    %v348 = vunpack.c.l.bf16 %v143
    %v349 = vunpack.c.h.bf16 %v143
    %v350 = vunpack.c.l.bf16 %v144
    %v351 = vunpack.c.h.bf16 %v144
    %v352 = vunpack.c.l.bf16 %v145
    %v353 = vunpack.c.h.bf16 %v145
    %v354 = vunpack.c.l.bf16 %v146
    %v355 = vunpack.c.h.bf16 %v146
    %v356 = vunpack.c.l.bf16 %v147
    %v357 = vunpack.c.h.bf16 %v147
    %v358 = vunpack.c.l.bf16 %v148
    %v359 = vunpack.c.h.bf16 %v148
    %v360 = vunpack.c.l.bf16 %v149
    %v361 = vunpack.c.h.bf16 %v149
    %v362 = vunpack.c.l.bf16 %v150
    %v363 = vunpack.c.h.bf16 %v150
    %v364 = vunpack.c.l.bf16 %v151
    %v365 = vunpack.c.h.bf16 %v151
    %v366 = vunpack.c.l.bf16 %v152
    %v367 = vunpack.c.h.bf16 %v152
    %v368 = vunpack.c.l.bf16 %v153
    %v369 = vunpack.c.h.bf16 %v153
    %v370 = vunpack.c.l.bf16 %v154
    %v371 = vunpack.c.h.bf16 %v154
    %v372 = vunpack.c.l.bf16 %v155
    %v373 = vunpack.c.h.bf16 %v155
    %v374 = vunpack.c.l.bf16 %v156
    %v375 = vunpack.c.h.bf16 %v156
    %v376 = vunpack.c.l.bf16 %v157
    %v377 = vunpack.c.h.bf16 %v157
    %v378 = vunpack.c.l.bf16 %v158
    %v379 = vunpack.c.h.bf16 %v158
    %v380 = vunpack.c.l.bf16 %v159
    %v381 = vunpack.c.h.bf16 %v159
    %v382 = vunpack.c.l.bf16 %v160
    %v383 = vunpack.c.h.bf16 %v160
    %v384 = vunpack.c.l.bf16 %v161
    %v385 = vunpack.c.h.bf16 %v161
    %v386 = vunpack.c.l.bf16 %v162
    %v387 = vunpack.c.h.bf16 %v162
    %v388 = vunpack.c.l.bf16 %v163
    %v389 = vunpack.c.h.bf16 %v163
    %v390 = vunpack.c.l.bf16 %v164
    %v391 = vunpack.c.h.bf16 %v164
    %v392 = vunpack.c.l.bf16 %v165
    %v393 = vunpack.c.h.bf16 %v165
    %v394 = vunpack.c.l.bf16 %v166
    %v395 = vunpack.c.h.bf16 %v166
    %v396 = vunpack.c.l.bf16 %v167
    %v397 = vunpack.c.h.bf16 %v167
    %v398 = vunpack.c.l.bf16 %v168
    %v399 = vunpack.c.h.bf16 %v168
    %v400 = vunpack.c.l.bf16 %v169
    %v401 = vunpack.c.h.bf16 %v169
    %v402 = vunpack.c.l.bf16 %v170
    %v403 = vunpack.c.h.bf16 %v170
    %v404 = vunpack.c.l.bf16 %v171
    %v405 = vunpack.c.h.bf16 %v171
    %v406 = vunpack.c.l.bf16 %v172
    %v407 = vunpack.c.h.bf16 %v172
    %v408 = vunpack.c.l.bf16 %v173
    %v409 = vunpack.c.h.bf16 %v173
    %v410 = vunpack.c.l.bf16 %v174
    %v411 = vunpack.c.h.bf16 %v174
    %v412 = vunpack.c.l.bf16 %v175
    %v413 = vunpack.c.h.bf16 %v175
    %v414 = vunpack.c.l.bf16 %v176
    %v415 = vunpack.c.h.bf16 %v176
    %v416 = vunpack.c.l.bf16 %v177
    %v417 = vunpack.c.h.bf16 %v177
    %v418 = vunpack.c.l.bf16 %v178
    %v419 = vunpack.c.h.bf16 %v178
    %v420 = vunpack.c.l.bf16 %v179
    %v421 = vunpack.c.h.bf16 %v179
    %v422 = vunpack.c.l.bf16 %v180
    %v423 = vunpack.c.h.bf16 %v180
    %v424 = vunpack.c.l.bf16 %v181
    %v425 = vunpack.c.h.bf16 %v181
    %v426 = vunpack.c.l.bf16 %v182
    %v427 = vunpack.c.h.bf16 %v182
    %v428 = vunpack.c.l.bf16 %v183
    %v429 = vunpack.c.h.bf16 %v183
    %v430 = vunpack.c.l.bf16 %v184
    %v431 = vunpack.c.h.bf16 %v184
    %v432 = vunpack.c.l.bf16 %v185
    %v433 = vunpack.c.h.bf16 %v185
    %v434 = vunpack.c.l.bf16 %v186
    %v435 = vunpack.c.h.bf16 %v186
    %v436 = vunpack.c.l.bf16 %v187
    %v437 = vunpack.c.h.bf16 %v187
    %v438 = vunpack.c.l.bf16 %v188
    %v439 = vunpack.c.h.bf16 %v188
    %v440 = vunpack.c.l.bf16 %v189
    %v441 = vunpack.c.h.bf16 %v189
    %v442 = vunpack.c.l.bf16 %v190
    %v443 = vunpack.c.h.bf16 %v190
    %v444 = vunpack.c.l.bf16 %v191
    %v445 = vunpack.c.h.bf16 %v191
    %v446 = vunpack.c.l.bf16 %v192
    %v447 = vunpack.c.h.bf16 %v192
    %v448 = vunpack.c.l.bf16 %v193
    %v449 = vunpack.c.h.bf16 %v193
    %v450 = vadd.f32 %v194, %v210
    %v451 = vadd.f32 %v450, %v226
    %v452 = vadd.f32 %v451, %v242
    %v453 = vadd.f32 %v452, %v258
    %v454 = vadd.f32 %v453, %v274
    %v455 = vadd.f32 %v454, %v290
    %v456 = vadd.f32 %v455, %v306
    %v457 = vrot.slane %v456, 4
    %v458 = vadd.f32 %v456, %v457
    %v459 = vrot.slane %v458, 2
    %v460 = vadd.f32 %v458, %v459
    %v461 = vrot.slane %v460, 1
    %v462 = vadd.f32 %v460, %v461
    %v463 = vadd.f32 %v195, %v211
    %v464 = vadd.f32 %v463, %v227
    %v465 = vadd.f32 %v464, %v243
    %v466 = vadd.f32 %v465, %v259
    %v467 = vadd.f32 %v466, %v275
    %v468 = vadd.f32 %v467, %v291
    %v469 = vadd.f32 %v468, %v307
    %v470 = vrot.slane %v469, 4
    %v471 = vadd.f32 %v469, %v470
    %v472 = vrot.slane %v471, 2
    %v473 = vadd.f32 %v471, %v472
    %v474 = vrot.slane %v473, 1
    %v475 = vadd.f32 %v473, %v474
    %v476 = vadd.f32 %v196, %v212
    %v477 = vadd.f32 %v476, %v228
    %v478 = vadd.f32 %v477, %v244
    %v479 = vadd.f32 %v478, %v260
    %v480 = vadd.f32 %v479, %v276
    %v481 = vadd.f32 %v480, %v292
    %v482 = vadd.f32 %v481, %v308
    %v483 = vrot.slane %v482, 4
    %v484 = vadd.f32 %v482, %v483
    %v485 = vrot.slane %v484, 2
    %v486 = vadd.f32 %v484, %v485
    %v487 = vrot.slane %v486, 1
    %v488 = vadd.f32 %v486, %v487
    %v489 = vadd.f32 %v197, %v213
    %v490 = vadd.f32 %v489, %v229
    %v491 = vadd.f32 %v490, %v245
    %v492 = vadd.f32 %v491, %v261
    %v493 = vadd.f32 %v492, %v277
    %v494 = vadd.f32 %v493, %v293
    %v495 = vadd.f32 %v494, %v309
    %v496 = vrot.slane %v495, 4
    %v497 = vadd.f32 %v495, %v496
    %v498 = vrot.slane %v497, 2
    %v499 = vadd.f32 %v497, %v498
    %v500 = vrot.slane %v499, 1
    %v501 = vadd.f32 %v499, %v500
    %v502 = vadd.f32 %v198, %v214
    %v503 = vadd.f32 %v502, %v230
    %v504 = vadd.f32 %v503, %v246
    %v505 = vadd.f32 %v504, %v262
    %v506 = vadd.f32 %v505, %v278
    %v507 = vadd.f32 %v506, %v294
    %v508 = vadd.f32 %v507, %v310
    %v509 = vrot.slane %v508, 4
    %v510 = vadd.f32 %v508, %v509
    %v511 = vrot.slane %v510, 2
    %v512 = vadd.f32 %v510, %v511
    %v513 = vrot.slane %v512, 1
    %v514 = vadd.f32 %v512, %v513
    %v515 = vadd.f32 %v199, %v215
    %v516 = vadd.f32 %v515, %v231
    %v517 = vadd.f32 %v516, %v247
    %v518 = vadd.f32 %v517, %v263
    %v519 = vadd.f32 %v518, %v279
    %v520 = vadd.f32 %v519, %v295
    %v521 = vadd.f32 %v520, %v311
    %v522 = vrot.slane %v521, 4
    %v523 = vadd.f32 %v521, %v522
    %v524 = vrot.slane %v523, 2
    %v525 = vadd.f32 %v523, %v524
    %v526 = vrot.slane %v525, 1
    %v527 = vadd.f32 %v525, %v526
    %v528 = vadd.f32 %v200, %v216
    %v529 = vadd.f32 %v528, %v232
    %v530 = vadd.f32 %v529, %v248
    %v531 = vadd.f32 %v530, %v264
    %v532 = vadd.f32 %v531, %v280
    %v533 = vadd.f32 %v532, %v296
    %v534 = vadd.f32 %v533, %v312
    %v535 = vrot.slane %v534, 4
    %v536 = vadd.f32 %v534, %v535
    %v537 = vrot.slane %v536, 2
    %v538 = vadd.f32 %v536, %v537
    %v539 = vrot.slane %v538, 1
    %v540 = vadd.f32 %v538, %v539
    %v541 = vadd.f32 %v201, %v217
    %v542 = vadd.f32 %v541, %v233
    %v543 = vadd.f32 %v542, %v249
    %v544 = vadd.f32 %v543, %v265
    %v545 = vadd.f32 %v544, %v281
    %v546 = vadd.f32 %v545, %v297
    %v547 = vadd.f32 %v546, %v313
    %v548 = vrot.slane %v547, 4
    %v549 = vadd.f32 %v547, %v548
    %v550 = vrot.slane %v549, 2
    %v551 = vadd.f32 %v549, %v550
    %v552 = vrot.slane %v551, 1
    %v553 = vadd.f32 %v551, %v552
    %v554 = vadd.f32 %v202, %v218
    %v555 = vadd.f32 %v554, %v234
    %v556 = vadd.f32 %v555, %v250
    %v557 = vadd.f32 %v556, %v266
    %v558 = vadd.f32 %v557, %v282
    %v559 = vadd.f32 %v558, %v298
    %v560 = vadd.f32 %v559, %v314
    %v561 = vrot.slane %v560, 4
    %v562 = vadd.f32 %v560, %v561
    %v563 = vrot.slane %v562, 2
    %v564 = vadd.f32 %v562, %v563
    %v565 = vrot.slane %v564, 1
    %v566 = vadd.f32 %v564, %v565
    %v567 = vadd.f32 %v203, %v219
    %v568 = vadd.f32 %v567, %v235
    %v569 = vadd.f32 %v568, %v251
    %v570 = vadd.f32 %v569, %v267
    %v571 = vadd.f32 %v570, %v283
    %v572 = vadd.f32 %v571, %v299
    %v573 = vadd.f32 %v572, %v315
    %v574 = vrot.slane %v573, 4
    %v575 = vadd.f32 %v573, %v574
    %v576 = vrot.slane %v575, 2
    %v577 = vadd.f32 %v575, %v576
    %v578 = vrot.slane %v577, 1
    %v579 = vadd.f32 %v577, %v578
    %v580 = vadd.f32 %v204, %v220
    %v581 = vadd.f32 %v580, %v236
    %v582 = vadd.f32 %v581, %v252
    %v583 = vadd.f32 %v582, %v268
    %v584 = vadd.f32 %v583, %v284
    %v585 = vadd.f32 %v584, %v300
    %v586 = vadd.f32 %v585, %v316
    %v587 = vrot.slane %v586, 4
    %v588 = vadd.f32 %v586, %v587
    %v589 = vrot.slane %v588, 2
    %v590 = vadd.f32 %v588, %v589
    %v591 = vrot.slane %v590, 1
    %v592 = vadd.f32 %v590, %v591
    %v593 = vadd.f32 %v205, %v221
    %v594 = vadd.f32 %v593, %v237
    %v595 = vadd.f32 %v594, %v253
    %v596 = vadd.f32 %v595, %v269
    %v597 = vadd.f32 %v596, %v285
    %v598 = vadd.f32 %v597, %v301
    %v599 = vadd.f32 %v598, %v317
    %v600 = vrot.slane %v599, 4
    %v601 = vadd.f32 %v599, %v600
    %v602 = vrot.slane %v601, 2
    %v603 = vadd.f32 %v601, %v602
    %v604 = vrot.slane %v603, 1
    %v605 = vadd.f32 %v603, %v604
    %v606 = vadd.f32 %v206, %v222
    %v607 = vadd.f32 %v606, %v238
    %v608 = vadd.f32 %v607, %v254
    %v609 = vadd.f32 %v608, %v270
    %v610 = vadd.f32 %v609, %v286
    %v611 = vadd.f32 %v610, %v302
    %v612 = vadd.f32 %v611, %v318
    %v613 = vrot.slane %v612, 4
    %v614 = vadd.f32 %v612, %v613
    %v615 = vrot.slane %v614, 2
    %v616 = vadd.f32 %v614, %v615
    %v617 = vrot.slane %v616, 1
    %v618 = vadd.f32 %v616, %v617
    %v619 = vadd.f32 %v207, %v223
    %v620 = vadd.f32 %v619, %v239
    %v621 = vadd.f32 %v620, %v255
    %v622 = vadd.f32 %v621, %v271
    %v623 = vadd.f32 %v622, %v287
    %v624 = vadd.f32 %v623, %v303
    %v625 = vadd.f32 %v624, %v319
    %v626 = vrot.slane %v625, 4
    %v627 = vadd.f32 %v625, %v626
    %v628 = vrot.slane %v627, 2
    %v629 = vadd.f32 %v627, %v628
    %v630 = vrot.slane %v629, 1
    %v631 = vadd.f32 %v629, %v630
    %v632 = vadd.f32 %v208, %v224
    %v633 = vadd.f32 %v632, %v240
    %v634 = vadd.f32 %v633, %v256
    %v635 = vadd.f32 %v634, %v272
    %v636 = vadd.f32 %v635, %v288
    %v637 = vadd.f32 %v636, %v304
    %v638 = vadd.f32 %v637, %v320
    %v639 = vrot.slane %v638, 4
    %v640 = vadd.f32 %v638, %v639
    %v641 = vrot.slane %v640, 2
    %v642 = vadd.f32 %v640, %v641
    %v643 = vrot.slane %v642, 1
    %v644 = vadd.f32 %v642, %v643
    %v645 = vadd.f32 %v209, %v225
    %v646 = vadd.f32 %v645, %v241
    %v647 = vadd.f32 %v646, %v257
    %v648 = vadd.f32 %v647, %v273
    %v649 = vadd.f32 %v648, %v289
    %v650 = vadd.f32 %v649, %v305
    %v651 = vadd.f32 %v650, %v321
    %v652 = vrot.slane %v651, 4
    %v653 = vadd.f32 %v651, %v652
    %v654 = vrot.slane %v653, 2
    %v655 = vadd.f32 %v653, %v654
    %v656 = vrot.slane %v655, 1
    %v657 = vadd.f32 %v655, %v656
    %v658 = vadd.f32 %v322, %v338
    %v659 = vadd.f32 %v658, %v354
    %v660 = vadd.f32 %v659, %v370
    %v661 = vadd.f32 %v660, %v386
    %v662 = vadd.f32 %v661, %v402
    %v663 = vadd.f32 %v662, %v418
    %v664 = vadd.f32 %v663, %v434
    %v665 = vrot.slane %v664, 4
    %v666 = vadd.f32 %v664, %v665
    %v667 = vrot.slane %v666, 2
    %v668 = vadd.f32 %v666, %v667
    %v669 = vrot.slane %v668, 1
    %v670 = vadd.f32 %v668, %v669
    %v671 = vadd.f32 %v323, %v339
    %v672 = vadd.f32 %v671, %v355
    %v673 = vadd.f32 %v672, %v371
    %v674 = vadd.f32 %v673, %v387
    %v675 = vadd.f32 %v674, %v403
    %v676 = vadd.f32 %v675, %v419
    %v677 = vadd.f32 %v676, %v435
    %v678 = vrot.slane %v677, 4
    %v679 = vadd.f32 %v677, %v678
    %v680 = vrot.slane %v679, 2
    %v681 = vadd.f32 %v679, %v680
    %v682 = vrot.slane %v681, 1
    %v683 = vadd.f32 %v681, %v682
    %v684 = vadd.f32 %v324, %v340
    %v685 = vadd.f32 %v684, %v356
    %v686 = vadd.f32 %v685, %v372
    %v687 = vadd.f32 %v686, %v388
    %v688 = vadd.f32 %v687, %v404
    %v689 = vadd.f32 %v688, %v420
    %v690 = vadd.f32 %v689, %v436
    %v691 = vrot.slane %v690, 4
    %v692 = vadd.f32 %v690, %v691
    %v693 = vrot.slane %v692, 2
    %v694 = vadd.f32 %v692, %v693
    %v695 = vrot.slane %v694, 1
    %v696 = vadd.f32 %v694, %v695
    %v697 = vadd.f32 %v325, %v341
    %v698 = vadd.f32 %v697, %v357
    %v699 = vadd.f32 %v698, %v373
    %v700 = vadd.f32 %v699, %v389
    %v701 = vadd.f32 %v700, %v405
    %v702 = vadd.f32 %v701, %v421
    %v703 = vadd.f32 %v702, %v437
    %v704 = vrot.slane %v703, 4
    %v705 = vadd.f32 %v703, %v704
    %v706 = vrot.slane %v705, 2
    %v707 = vadd.f32 %v705, %v706
    %v708 = vrot.slane %v707, 1
    %v709 = vadd.f32 %v707, %v708
    %v710 = vadd.f32 %v326, %v342
    %v711 = vadd.f32 %v710, %v358
    %v712 = vadd.f32 %v711, %v374
    %v713 = vadd.f32 %v712, %v390
    %v714 = vadd.f32 %v713, %v406
    %v715 = vadd.f32 %v714, %v422
    %v716 = vadd.f32 %v715, %v438
    %v717 = vrot.slane %v716, 4
    %v718 = vadd.f32 %v716, %v717
    %v719 = vrot.slane %v718, 2
    %v720 = vadd.f32 %v718, %v719
    %v721 = vrot.slane %v720, 1
    %v722 = vadd.f32 %v720, %v721
    %v723 = vadd.f32 %v327, %v343
    %v724 = vadd.f32 %v723, %v359
    %v725 = vadd.f32 %v724, %v375
    %v726 = vadd.f32 %v725, %v391
    %v727 = vadd.f32 %v726, %v407
    %v728 = vadd.f32 %v727, %v423
    %v729 = vadd.f32 %v728, %v439
    %v730 = vrot.slane %v729, 4
    %v731 = vadd.f32 %v729, %v730
    %v732 = vrot.slane %v731, 2
    %v733 = vadd.f32 %v731, %v732
    %v734 = vrot.slane %v733, 1
    %v735 = vadd.f32 %v733, %v734
    %v736 = vadd.f32 %v328, %v344
    %v737 = vadd.f32 %v736, %v360
    %v738 = vadd.f32 %v737, %v376
    %v739 = vadd.f32 %v738, %v392
    %v740 = vadd.f32 %v739, %v408
    %v741 = vadd.f32 %v740, %v424
    %v742 = vadd.f32 %v741, %v440
    %v743 = vrot.slane %v742, 4
    %v744 = vadd.f32 %v742, %v743
    %v745 = vrot.slane %v744, 2
    %v746 = vadd.f32 %v744, %v745
    %v747 = vrot.slane %v746, 1
    %v748 = vadd.f32 %v746, %v747
    %v749 = vadd.f32 %v329, %v345
    %v750 = vadd.f32 %v749, %v361
    %v751 = vadd.f32 %v750, %v377
    %v752 = vadd.f32 %v751, %v393
    %v753 = vadd.f32 %v752, %v409
    %v754 = vadd.f32 %v753, %v425
    %v755 = vadd.f32 %v754, %v441
    %v756 = vrot.slane %v755, 4
    %v757 = vadd.f32 %v755, %v756
    %v758 = vrot.slane %v757, 2
    %v759 = vadd.f32 %v757, %v758
    %v760 = vrot.slane %v759, 1
    %v761 = vadd.f32 %v759, %v760
    %v762 = vadd.f32 %v330, %v346
    %v763 = vadd.f32 %v762, %v362
    %v764 = vadd.f32 %v763, %v378
    %v765 = vadd.f32 %v764, %v394
    %v766 = vadd.f32 %v765, %v410
    %v767 = vadd.f32 %v766, %v426
    %v768 = vadd.f32 %v767, %v442
    %v769 = vrot.slane %v768, 4
    %v770 = vadd.f32 %v768, %v769
    %v771 = vrot.slane %v770, 2
    %v772 = vadd.f32 %v770, %v771
    %v773 = vrot.slane %v772, 1
    %v774 = vadd.f32 %v772, %v773
    %v775 = vadd.f32 %v331, %v347
    %v776 = vadd.f32 %v775, %v363
    %v777 = vadd.f32 %v776, %v379
    %v778 = vadd.f32 %v777, %v395
    %v779 = vadd.f32 %v778, %v411
    %v780 = vadd.f32 %v779, %v427
    %v781 = vadd.f32 %v780, %v443
    %v782 = vrot.slane %v781, 4
    %v783 = vadd.f32 %v781, %v782
    %v784 = vrot.slane %v783, 2
    %v785 = vadd.f32 %v783, %v784
    %v786 = vrot.slane %v785, 1
    %v787 = vadd.f32 %v785, %v786
    %v788 = vadd.f32 %v332, %v348
    %v789 = vadd.f32 %v788, %v364
    %v790 = vadd.f32 %v789, %v380
    %v791 = vadd.f32 %v790, %v396
    %v792 = vadd.f32 %v791, %v412
    %v793 = vadd.f32 %v792, %v428
    %v794 = vadd.f32 %v793, %v444
    %v795 = vrot.slane %v794, 4
    %v796 = vadd.f32 %v794, %v795
    %v797 = vrot.slane %v796, 2
    %v798 = vadd.f32 %v796, %v797
    %v799 = vrot.slane %v798, 1
    %v800 = vadd.f32 %v798, %v799
    %v801 = vadd.f32 %v333, %v349
    %v802 = vadd.f32 %v801, %v365
    %v803 = vadd.f32 %v802, %v381
    %v804 = vadd.f32 %v803, %v397
    %v805 = vadd.f32 %v804, %v413
    %v806 = vadd.f32 %v805, %v429
    %v807 = vadd.f32 %v806, %v445
    %v808 = vrot.slane %v807, 4
    %v809 = vadd.f32 %v807, %v808
    %v810 = vrot.slane %v809, 2
    %v811 = vadd.f32 %v809, %v810
    %v812 = vrot.slane %v811, 1
    %v813 = vadd.f32 %v811, %v812
    %v814 = vadd.f32 %v334, %v350
    %v815 = vadd.f32 %v814, %v366
    %v816 = vadd.f32 %v815, %v382
    %v817 = vadd.f32 %v816, %v398
    %v818 = vadd.f32 %v817, %v414
    %v819 = vadd.f32 %v818, %v430
    %v820 = vadd.f32 %v819, %v446
    %v821 = vrot.slane %v820, 4
    %v822 = vadd.f32 %v820, %v821
    %v823 = vrot.slane %v822, 2
    %v824 = vadd.f32 %v822, %v823
    %v825 = vrot.slane %v824, 1
    %v826 = vadd.f32 %v824, %v825
    %v827 = vadd.f32 %v335, %v351
    %v828 = vadd.f32 %v827, %v367
    %v829 = vadd.f32 %v828, %v383
    %v830 = vadd.f32 %v829, %v399
    %v831 = vadd.f32 %v830, %v415
    %v832 = vadd.f32 %v831, %v431
    %v833 = vadd.f32 %v832, %v447
    %v834 = vrot.slane %v833, 4
    %v835 = vadd.f32 %v833, %v834
    %v836 = vrot.slane %v835, 2
    %v837 = vadd.f32 %v835, %v836
    %v838 = vrot.slane %v837, 1
    %v839 = vadd.f32 %v837, %v838
    %v840 = vadd.f32 %v336, %v352
    %v841 = vadd.f32 %v840, %v368
    %v842 = vadd.f32 %v841, %v384
    %v843 = vadd.f32 %v842, %v400
    %v844 = vadd.f32 %v843, %v416
    %v845 = vadd.f32 %v844, %v432
    %v846 = vadd.f32 %v845, %v448
    %v847 = vrot.slane %v846, 4
    %v848 = vadd.f32 %v846, %v847
    %v849 = vrot.slane %v848, 2
    %v850 = vadd.f32 %v848, %v849
    %v851 = vrot.slane %v850, 1
    %v852 = vadd.f32 %v850, %v851
    %v853 = vadd.f32 %v337, %v353
    %v854 = vadd.f32 %v853, %v369
    %v855 = vadd.f32 %v854, %v385
    %v856 = vadd.f32 %v855, %v401
    %v857 = vadd.f32 %v856, %v417
    %v858 = vadd.f32 %v857, %v433
    %v859 = vadd.f32 %v858, %v449
    %v860 = vrot.slane %v859, 4
    %v861 = vadd.f32 %v859, %v860
    %v862 = vrot.slane %v861, 2
    %v863 = vadd.f32 %v861, %v862
    %v864 = vrot.slane %v863, 1
    %v865 = vadd.f32 %v863, %v864
    %v898 = vcombine.low %v462, %v475
    %v899 = vcombine.low %v488, %v501
    %v901 = vunpack.c.l.s4 1983009808
    %v902 = vunpack.c.0.s8 %v901
    %v903 = vlaneseq
    %v904 = vshrl.u32 %v903, 7
    %v905 = vsub.s32 %v902, %v904
    %v906 = vrot.slane %v898, %v905
    %v908 = vunpack.c.l.s4 1983009808
    %v909 = vunpack.c.0.s8 %v908
    %v910 = vlaneseq
    %v911 = vshrl.u32 %v910, 7
    %v912 = vsub.s32 %v909, %v911
    %v913 = vrot.slane %v899, %v912
    %v914 = vcombine.low %v906, %v913
    %v915 = vcombine.low %v514, %v527
    %v916 = vcombine.low %v540, %v553
    %v918 = vunpack.c.l.s4 1983009808
    %v919 = vunpack.c.0.s8 %v918
    %v920 = vlaneseq
    %v921 = vshrl.u32 %v920, 7
    %v922 = vsub.s32 %v919, %v921
    %v923 = vrot.slane %v915, %v922
    %v925 = vunpack.c.l.s4 1983009808
    %v926 = vunpack.c.0.s8 %v925
    %v927 = vlaneseq
    %v928 = vshrl.u32 %v927, 7
    %v929 = vsub.s32 %v926, %v928
    %v930 = vrot.slane %v916, %v929
    %v931 = vcombine.low %v923, %v930
    %v932 = vcombine.low %v566, %v579
    %v933 = vcombine.low %v592, %v605
    %v935 = vunpack.c.l.s4 1983009808
    %v936 = vunpack.c.0.s8 %v935
    %v937 = vlaneseq
    %v938 = vshrl.u32 %v937, 7
    %v939 = vsub.s32 %v936, %v938
    %v940 = vrot.slane %v932, %v939
    %v942 = vunpack.c.l.s4 1983009808
    %v943 = vunpack.c.0.s8 %v942
    %v944 = vlaneseq
    %v945 = vshrl.u32 %v944, 7
    %v946 = vsub.s32 %v943, %v945
    %v947 = vrot.slane %v933, %v946
    %v948 = vcombine.low %v940, %v947
    %v949 = vcombine.low %v618, %v631
    %v950 = vcombine.low %v644, %v657
    %v952 = vunpack.c.l.s4 1983009808
    %v953 = vunpack.c.0.s8 %v952
    %v954 = vlaneseq
    %v955 = vshrl.u32 %v954, 7
    %v956 = vsub.s32 %v953, %v955
    %v957 = vrot.slane %v949, %v956
    %v959 = vunpack.c.l.s4 1983009808
    %v960 = vunpack.c.0.s8 %v959
    %v961 = vlaneseq
    %v962 = vshrl.u32 %v961, 7
    %v963 = vsub.s32 %v960, %v962
    %v964 = vrot.slane %v950, %v963
    %v965 = vcombine.low %v957, %v964
    %v966 = vcombine.low %v670, %v683
    %v967 = vcombine.low %v696, %v709
    %v969 = vunpack.c.l.s4 1983009808
    %v970 = vunpack.c.0.s8 %v969
    %v971 = vlaneseq
    %v972 = vshrl.u32 %v971, 7
    %v973 = vsub.s32 %v970, %v972
    %v974 = vrot.slane %v966, %v973
    %v976 = vunpack.c.l.s4 1983009808
    %v977 = vunpack.c.0.s8 %v976
    %v978 = vlaneseq
    %v979 = vshrl.u32 %v978, 7
    %v980 = vsub.s32 %v977, %v979
    %v981 = vrot.slane %v967, %v980
    %v982 = vcombine.low %v974, %v981
    %v983 = vcombine.low %v722, %v735
    %v984 = vcombine.low %v748, %v761
    %v986 = vunpack.c.l.s4 1983009808
    %v987 = vunpack.c.0.s8 %v986
    %v988 = vlaneseq
    %v989 = vshrl.u32 %v988, 7
    %v990 = vsub.s32 %v987, %v989
    %v991 = vrot.slane %v983, %v990
    %v993 = vunpack.c.l.s4 1983009808
    %v994 = vunpack.c.0.s8 %v993
    %v995 = vlaneseq
    %v996 = vshrl.u32 %v995, 7
    %v997 = vsub.s32 %v994, %v996
    %v998 = vrot.slane %v984, %v997
    %v999 = vcombine.low %v991, %v998
    %v1000 = vcombine.low %v774, %v787
    %v1001 = vcombine.low %v800, %v813
    %v1003 = vunpack.c.l.s4 1983009808
    %v1004 = vunpack.c.0.s8 %v1003
    %v1005 = vlaneseq
    %v1006 = vshrl.u32 %v1005, 7
    %v1007 = vsub.s32 %v1004, %v1006
    %v1008 = vrot.slane %v1000, %v1007
    %v1010 = vunpack.c.l.s4 1983009808
    %v1011 = vunpack.c.0.s8 %v1010
    %v1012 = vlaneseq
    %v1013 = vshrl.u32 %v1012, 7
    %v1014 = vsub.s32 %v1011, %v1013
    %v1015 = vrot.slane %v1001, %v1014
    %v1016 = vcombine.low %v1008, %v1015
    %v1017 = vcombine.low %v826, %v839
    %v1018 = vcombine.low %v852, %v865
    %v1020 = vunpack.c.l.s4 1983009808
    %v1021 = vunpack.c.0.s8 %v1020
    %v1022 = vlaneseq
    %v1023 = vshrl.u32 %v1022, 7
    %v1024 = vsub.s32 %v1021, %v1023
    %v1025 = vrot.slane %v1017, %v1024
    %v1027 = vunpack.c.l.s4 1983009808
    %v1028 = vunpack.c.0.s8 %v1027
    %v1029 = vlaneseq
    %v1030 = vshrl.u32 %v1029, 7
    %v1031 = vsub.s32 %v1028, %v1030
    %v1032 = vrot.slane %v1018, %v1031
    %v1033 = vcombine.low %v1025, %v1032
    %vm1034 = vcmask 1044484
    %v1035 = vsel %vm1034, %v914, %v914
    %vm1036 = vcmask 1046534
    %v1037 = vsel %vm1036, %v914, %v1035
    %v1038 = vrot.slane %v982, 7
    %vm1039 = vcmask 1041409
    %v1040 = vsel %vm1039, %v1038, %v1037
    %vm1041 = vcmask 1043459
    %v1042 = vsel %vm1041, %v1038, %v1040
    %vm1043 = vcmask 1045509
    %v1044 = vsel %vm1043, %v1038, %v1042
    %vm1045 = vcmask 1047559
    %v1046 = vsel %vm1045, %v1038, %v1044
    %v1047 = vsel %vm1034, %v931, %v931
    %v1048 = vsel %vm1036, %v931, %v1047
    %v1049 = vrot.slane %v999, 7
    %v1050 = vsel %vm1039, %v1049, %v1048
    %v1051 = vsel %vm1041, %v1049, %v1050
    %v1052 = vsel %vm1043, %v1049, %v1051
    %v1053 = vsel %vm1045, %v1049, %v1052
    %v1054 = vsel %vm1034, %v948, %v948
    %v1055 = vsel %vm1036, %v948, %v1054
    %v1056 = vrot.slane %v1016, 7
    %v1057 = vsel %vm1039, %v1056, %v1055
    %v1058 = vsel %vm1041, %v1056, %v1057
    %v1059 = vsel %vm1043, %v1056, %v1058
    %v1060 = vsel %vm1045, %v1056, %v1059
    %v1061 = vsel %vm1034, %v965, %v965
    %v1062 = vsel %vm1036, %v965, %v1061
    %v1063 = vrot.slane %v1033, 7
    %v1064 = vsel %vm1039, %v1063, %v1062
    %v1065 = vsel %vm1041, %v1063, %v1064
    %v1066 = vsel %vm1043, %v1063, %v1065
    %v1067 = vsel %vm1045, %v1063, %v1066
    %v1072 = vadd.f32 %v62, %v1046
    %v1073 = vadd.f32 %v63, %v1053
    %v1074 = vadd.f32 %v64, %v1060
    %v1075 = vadd.f32 %v65, %v1067
    %1076 = vst [vmem:[#allocation2] sm:$0xff] %v1072
    %1077 = vst [vmem:[#allocation2 + $0x8] sm:$0xff] %v1073
    %1078 = vst [vmem:[#allocation2 + $0x10] sm:$0xff] %v1074
    %1079 = vst [vmem:[#allocation2 + $0x18] sm:$0xff] %v1075
    // Predicated region
    $region30: #{tpu_custom_call.1} parent=1 // pred_check
      %p1080 = pneg %p54
    $region31: #{tpu_custom_call.1} parent=1 // pred_check_branch
      %1082 = sbr.rel (%p1080) target = $region33
    $region32: #{tpu_custom_call.1} parent=1 // pred_region
      %v1083 = vld [vmem:[#allocation2] sm:$0xff]
      %v1084 = vld [vmem:[#allocation2 + $0x8] sm:$0xff]
      %v1085 = vld [vmem:[#allocation2 + $0x10] sm:$0xff]
      %v1086 = vld [vmem:[#allocation2 + $0x18] sm:$0xff]
      %v1087 = vld [vmem:[#allocation6] sm:$0xff]
      %v1088 = vld [vmem:[#allocation6 + $0x8] sm:$0xff]
      %v1089 = vld [vmem:[#allocation6 + $0x10] sm:$0xff]
      %v1090 = vld [vmem:[#allocation6 + $0x18] sm:$0xff]
      %v1091 = vld [vmem:[#allocation6 + $0x20] sm:$0xff]
      %v1092 = vld [vmem:[#allocation6 + $0x28] sm:$0xff]
      %v1093 = vld [vmem:[#allocation6 + $0x30] sm:$0xff]
      %v1094 = vld [vmem:[#allocation6 + $0x38] sm:$0xff]
      %v1095 = vld [vmem:[#allocation6 + $0x40] sm:$0xff]
      %v1096 = vld [vmem:[#allocation6 + $0x48] sm:$0xff]
      %v1097 = vld [vmem:[#allocation6 + $0x50] sm:$0xff]
      %v1098 = vld [vmem:[#allocation6 + $0x58] sm:$0xff]
      %v1099 = vld [vmem:[#allocation6 + $0x60] sm:$0xff]
      %v1100 = vld [vmem:[#allocation6 + $0x68] sm:$0xff]
      %v1101 = vld [vmem:[#allocation6 + $0x70] sm:$0xff]
      %v1102 = vld [vmem:[#allocation6 + $0x78] sm:$0xff]
      %v1103 = vld [vmem:[#allocation6 + $0x80] sm:$0xff]
      %v1104 = vld [vmem:[#allocation6 + $0x88] sm:$0xff]
      %v1105 = vld [vmem:[#allocation6 + $0x90] sm:$0xff]
      %v1106 = vld [vmem:[#allocation6 + $0x98] sm:$0xff]
      %v1107 = vld [vmem:[#allocation6 + $0xa0] sm:$0xff]
      %v1108 = vld [vmem:[#allocation6 + $0xa8] sm:$0xff]
      %v1109 = vld [vmem:[#allocation6 + $0xb0] sm:$0xff]
      %v1110 = vld [vmem:[#allocation6 + $0xb8] sm:$0xff]
      %v1111 = vld [vmem:[#allocation6 + $0xc0] sm:$0xff]
      %v1112 = vld [vmem:[#allocation6 + $0xc8] sm:$0xff]
      %v1113 = vld [vmem:[#allocation6 + $0xd0] sm:$0xff]
      %v1114 = vld [vmem:[#allocation6 + $0xd8] sm:$0xff]
      %v1115 = vld [vmem:[#allocation6 + $0xe0] sm:$0xff]
      %v1116 = vld [vmem:[#allocation6 + $0xe8] sm:$0xff]
      %v1117 = vld [vmem:[#allocation6 + $0xf0] sm:$0xff]
      %v1118 = vld [vmem:[#allocation6 + $0xf8] sm:$0xff]
      %v1119 = vld [vmem:[#allocation6 + $0x100] sm:$0xff]
      %v1120 = vld [vmem:[#allocation6 + $0x108] sm:$0xff]
      %v1121 = vld [vmem:[#allocation6 + $0x110] sm:$0xff]
      %v1122 = vld [vmem:[#allocation6 + $0x118] sm:$0xff]
      %v1123 = vld [vmem:[#allocation6 + $0x120] sm:$0xff]
      %v1124 = vld [vmem:[#allocation6 + $0x128] sm:$0xff]
      %v1125 = vld [vmem:[#allocation6 + $0x130] sm:$0xff]
      %v1126 = vld [vmem:[#allocation6 + $0x138] sm:$0xff]
      %v1127 = vld [vmem:[#allocation6 + $0x140] sm:$0xff]
      %v1128 = vld [vmem:[#allocation6 + $0x148] sm:$0xff]
      %v1129 = vld [vmem:[#allocation6 + $0x150] sm:$0xff]
      %v1130 = vld [vmem:[#allocation6 + $0x158] sm:$0xff]
      %v1131 = vld [vmem:[#allocation6 + $0x160] sm:$0xff]
      %v1132 = vld [vmem:[#allocation6 + $0x168] sm:$0xff]
      %v1133 = vld [vmem:[#allocation6 + $0x170] sm:$0xff]
      %v1134 = vld [vmem:[#allocation6 + $0x178] sm:$0xff]
      %v1135 = vld [vmem:[#allocation6 + $0x180] sm:$0xff]
      %v1136 = vld [vmem:[#allocation6 + $0x188] sm:$0xff]
      %v1137 = vld [vmem:[#allocation6 + $0x190] sm:$0xff]
      %v1138 = vld [vmem:[#allocation6 + $0x198] sm:$0xff]
      %v1139 = vld [vmem:[#allocation6 + $0x1a0] sm:$0xff]
      %v1140 = vld [vmem:[#allocation6 + $0x1a8] sm:$0xff]
      %v1141 = vld [vmem:[#allocation6 + $0x1b0] sm:$0xff]
      %v1142 = vld [vmem:[#allocation6 + $0x1b8] sm:$0xff]
      %v1143 = vld [vmem:[#allocation6 + $0x1c0] sm:$0xff]
      %v1144 = vld [vmem:[#allocation6 + $0x1c8] sm:$0xff]
      %v1145 = vld [vmem:[#allocation6 + $0x1d0] sm:$0xff]
      %v1146 = vld [vmem:[#allocation6 + $0x1d8] sm:$0xff]
      %v1147 = vld [vmem:[#allocation6 + $0x1e0] sm:$0xff]
      %v1148 = vld [vmem:[#allocation6 + $0x1e8] sm:$0xff]
      %v1149 = vld [vmem:[#allocation6 + $0x1f0] sm:$0xff]
      %v1150 = vld [vmem:[#allocation6 + $0x1f8] sm:$0xff]
      %v1151 = vld [vmem:[#allocation6 + $0x200] sm:$0xff]
      %v1152 = vld [vmem:[#allocation6 + $0x208] sm:$0xff]
      %v1153 = vld [vmem:[#allocation6 + $0x210] sm:$0xff]
      %v1154 = vld [vmem:[#allocation6 + $0x218] sm:$0xff]
      %v1155 = vld [vmem:[#allocation6 + $0x220] sm:$0xff]
      %v1156 = vld [vmem:[#allocation6 + $0x228] sm:$0xff]
      %v1157 = vld [vmem:[#allocation6 + $0x230] sm:$0xff]
      %v1158 = vld [vmem:[#allocation6 + $0x238] sm:$0xff]
      %v1159 = vld [vmem:[#allocation6 + $0x240] sm:$0xff]
      %v1160 = vld [vmem:[#allocation6 + $0x248] sm:$0xff]
      %v1161 = vld [vmem:[#allocation6 + $0x250] sm:$0xff]
      %v1162 = vld [vmem:[#allocation6 + $0x258] sm:$0xff]
      %v1163 = vld [vmem:[#allocation6 + $0x260] sm:$0xff]
      %v1164 = vld [vmem:[#allocation6 + $0x268] sm:$0xff]
      %v1165 = vld [vmem:[#allocation6 + $0x270] sm:$0xff]
      %v1166 = vld [vmem:[#allocation6 + $0x278] sm:$0xff]
      %v1167 = vld [vmem:[#allocation6 + $0x280] sm:$0xff]
      %v1168 = vld [vmem:[#allocation6 + $0x288] sm:$0xff]
      %v1169 = vld [vmem:[#allocation6 + $0x290] sm:$0xff]
      %v1170 = vld [vmem:[#allocation6 + $0x298] sm:$0xff]
      %v1171 = vld [vmem:[#allocation6 + $0x2a0] sm:$0xff]
      %v1172 = vld [vmem:[#allocation6 + $0x2a8] sm:$0xff]
      %v1173 = vld [vmem:[#allocation6 + $0x2b0] sm:$0xff]
      %v1174 = vld [vmem:[#allocation6 + $0x2b8] sm:$0xff]
      %v1175 = vld [vmem:[#allocation6 + $0x2c0] sm:$0xff]
      %v1176 = vld [vmem:[#allocation6 + $0x2c8] sm:$0xff]
      %v1177 = vld [vmem:[#allocation6 + $0x2d0] sm:$0xff]
      %v1178 = vld [vmem:[#allocation6 + $0x2d8] sm:$0xff]
      %v1179 = vld [vmem:[#allocation6 + $0x2e0] sm:$0xff]
      %v1180 = vld [vmem:[#allocation6 + $0x2e8] sm:$0xff]
      %v1181 = vld [vmem:[#allocation6 + $0x2f0] sm:$0xff]
      %v1182 = vld [vmem:[#allocation6 + $0x2f8] sm:$0xff]
      %v1183 = vld [vmem:[#allocation6 + $0x300] sm:$0xff]
      %v1184 = vld [vmem:[#allocation6 + $0x308] sm:$0xff]
      %v1185 = vld [vmem:[#allocation6 + $0x310] sm:$0xff]
      %v1186 = vld [vmem:[#allocation6 + $0x318] sm:$0xff]
      %v1187 = vld [vmem:[#allocation6 + $0x320] sm:$0xff]
      %v1188 = vld [vmem:[#allocation6 + $0x328] sm:$0xff]
      %v1189 = vld [vmem:[#allocation6 + $0x330] sm:$0xff]
      %v1190 = vld [vmem:[#allocation6 + $0x338] sm:$0xff]
      %v1191 = vld [vmem:[#allocation6 + $0x340] sm:$0xff]
      %v1192 = vld [vmem:[#allocation6 + $0x348] sm:$0xff]
      %v1193 = vld [vmem:[#allocation6 + $0x350] sm:$0xff]
      %v1194 = vld [vmem:[#allocation6 + $0x358] sm:$0xff]
      %v1195 = vld [vmem:[#allocation6 + $0x360] sm:$0xff]
      %v1196 = vld [vmem:[#allocation6 + $0x368] sm:$0xff]
      %v1197 = vld [vmem:[#allocation6 + $0x370] sm:$0xff]
      %v1198 = vld [vmem:[#allocation6 + $0x378] sm:$0xff]
      %v1199 = vld [vmem:[#allocation6 + $0x380] sm:$0xff]
      %v1200 = vld [vmem:[#allocation6 + $0x388] sm:$0xff]
      %v1201 = vld [vmem:[#allocation6 + $0x390] sm:$0xff]
      %v1202 = vld [vmem:[#allocation6 + $0x398] sm:$0xff]
      %v1203 = vld [vmem:[#allocation6 + $0x3a0] sm:$0xff]
      %v1204 = vld [vmem:[#allocation6 + $0x3a8] sm:$0xff]
      %v1205 = vld [vmem:[#allocation6 + $0x3b0] sm:$0xff]
      %v1206 = vld [vmem:[#allocation6 + $0x3b8] sm:$0xff]
      %v1207 = vld [vmem:[#allocation6 + $0x3c0] sm:$0xff]
      %v1208 = vld [vmem:[#allocation6 + $0x3c8] sm:$0xff]
      %v1209 = vld [vmem:[#allocation6 + $0x3d0] sm:$0xff]
      %v1210 = vld [vmem:[#allocation6 + $0x3d8] sm:$0xff]
      %v1211 = vld [vmem:[#allocation6 + $0x3e0] sm:$0xff]
      %v1212 = vld [vmem:[#allocation6 + $0x3e8] sm:$0xff]
      %v1213 = vld [vmem:[#allocation6 + $0x3f0] sm:$0xff]
      %v1214 = vld [vmem:[#allocation6 + $0x3f8] sm:$0xff]
      %v1215 = vld [vmem:[#allocation6 + $0x400] sm:$0xff]
      %v1216 = vld [vmem:[#allocation6 + $0x408] sm:$0xff]
      %v1217 = vld [vmem:[#allocation6 + $0x410] sm:$0xff]
      %v1218 = vld [vmem:[#allocation6 + $0x418] sm:$0xff]
      %v1219 = vld [vmem:[#allocation6 + $0x420] sm:$0xff]
      %v1220 = vld [vmem:[#allocation6 + $0x428] sm:$0xff]
      %v1221 = vld [vmem:[#allocation6 + $0x430] sm:$0xff]
      %v1222 = vld [vmem:[#allocation6 + $0x438] sm:$0xff]
      %v1223 = vld [vmem:[#allocation6 + $0x440] sm:$0xff]
      %v1224 = vld [vmem:[#allocation6 + $0x448] sm:$0xff]
      %v1225 = vld [vmem:[#allocation6 + $0x450] sm:$0xff]
      %v1226 = vld [vmem:[#allocation6 + $0x458] sm:$0xff]
      %v1227 = vld [vmem:[#allocation6 + $0x460] sm:$0xff]
      %v1228 = vld [vmem:[#allocation6 + $0x468] sm:$0xff]
      %v1229 = vld [vmem:[#allocation6 + $0x470] sm:$0xff]
      %v1230 = vld [vmem:[#allocation6 + $0x478] sm:$0xff]
      %v1231 = vld [vmem:[#allocation6 + $0x480] sm:$0xff]
      %v1232 = vld [vmem:[#allocation6 + $0x488] sm:$0xff]
      %v1233 = vld [vmem:[#allocation6 + $0x490] sm:$0xff]
      %v1234 = vld [vmem:[#allocation6 + $0x498] sm:$0xff]
      %v1235 = vld [vmem:[#allocation6 + $0x4a0] sm:$0xff]
      %v1236 = vld [vmem:[#allocation6 + $0x4a8] sm:$0xff]
      %v1237 = vld [vmem:[#allocation6 + $0x4b0] sm:$0xff]
      %v1238 = vld [vmem:[#allocation6 + $0x4b8] sm:$0xff]
      %v1239 = vld [vmem:[#allocation6 + $0x4c0] sm:$0xff]
      %v1240 = vld [vmem:[#allocation6 + $0x4c8] sm:$0xff]
      %v1241 = vld [vmem:[#allocation6 + $0x4d0] sm:$0xff]
      %v1242 = vld [vmem:[#allocation6 + $0x4d8] sm:$0xff]
      %v1243 = vld [vmem:[#allocation6 + $0x4e0] sm:$0xff]
      %v1244 = vld [vmem:[#allocation6 + $0x4e8] sm:$0xff]
      %v1245 = vld [vmem:[#allocation6 + $0x4f0] sm:$0xff]
      %v1246 = vld [vmem:[#allocation6 + $0x4f8] sm:$0xff]
      %v1247 = vld [vmem:[#allocation6 + $0x500] sm:$0xff]
      %v1248 = vld [vmem:[#allocation6 + $0x508] sm:$0xff]
      %v1249 = vld [vmem:[#allocation6 + $0x510] sm:$0xff]
      %v1250 = vld [vmem:[#allocation6 + $0x518] sm:$0xff]
      %v1251 = vld [vmem:[#allocation6 + $0x520] sm:$0xff]
      %v1252 = vld [vmem:[#allocation6 + $0x528] sm:$0xff]
      %v1253 = vld [vmem:[#allocation6 + $0x530] sm:$0xff]
      %v1254 = vld [vmem:[#allocation6 + $0x538] sm:$0xff]
      %v1255 = vld [vmem:[#allocation6 + $0x540] sm:$0xff]
      %v1256 = vld [vmem:[#allocation6 + $0x548] sm:$0xff]
      %v1257 = vld [vmem:[#allocation6 + $0x550] sm:$0xff]
      %v1258 = vld [vmem:[#allocation6 + $0x558] sm:$0xff]
      %v1259 = vld [vmem:[#allocation6 + $0x560] sm:$0xff]
      %v1260 = vld [vmem:[#allocation6 + $0x568] sm:$0xff]
      %v1261 = vld [vmem:[#allocation6 + $0x570] sm:$0xff]
      %v1262 = vld [vmem:[#allocation6 + $0x578] sm:$0xff]
      %v1263 = vld [vmem:[#allocation6 + $0x580] sm:$0xff]
      %v1264 = vld [vmem:[#allocation6 + $0x588] sm:$0xff]
      %v1265 = vld [vmem:[#allocation6 + $0x590] sm:$0xff]
      %v1266 = vld [vmem:[#allocation6 + $0x598] sm:$0xff]
      %v1267 = vld [vmem:[#allocation6 + $0x5a0] sm:$0xff]
      %v1268 = vld [vmem:[#allocation6 + $0x5a8] sm:$0xff]
      %v1269 = vld [vmem:[#allocation6 + $0x5b0] sm:$0xff]
      %v1270 = vld [vmem:[#allocation6 + $0x5b8] sm:$0xff]
      %v1271 = vld [vmem:[#allocation6 + $0x5c0] sm:$0xff]
      %v1272 = vld [vmem:[#allocation6 + $0x5c8] sm:$0xff]
      %v1273 = vld [vmem:[#allocation6 + $0x5d0] sm:$0xff]
      %v1274 = vld [vmem:[#allocation6 + $0x5d8] sm:$0xff]
      %v1275 = vld [vmem:[#allocation6 + $0x5e0] sm:$0xff]
      %v1276 = vld [vmem:[#allocation6 + $0x5e8] sm:$0xff]
      %v1277 = vld [vmem:[#allocation6 + $0x5f0] sm:$0xff]
      %v1278 = vld [vmem:[#allocation6 + $0x5f8] sm:$0xff]
      %v1279 = vld [vmem:[#allocation6 + $0x600] sm:$0xff]
      %v1280 = vld [vmem:[#allocation6 + $0x608] sm:$0xff]
      %v1281 = vld [vmem:[#allocation6 + $0x610] sm:$0xff]
      %v1282 = vld [vmem:[#allocation6 + $0x618] sm:$0xff]
      %v1283 = vld [vmem:[#allocation6 + $0x620] sm:$0xff]
      %v1284 = vld [vmem:[#allocation6 + $0x628] sm:$0xff]
      %v1285 = vld [vmem:[#allocation6 + $0x630] sm:$0xff]
      %v1286 = vld [vmem:[#allocation6 + $0x638] sm:$0xff]
      %v1287 = vld [vmem:[#allocation6 + $0x640] sm:$0xff]
      %v1288 = vld [vmem:[#allocation6 + $0x648] sm:$0xff]
      %v1289 = vld [vmem:[#allocation6 + $0x650] sm:$0xff]
      %v1290 = vld [vmem:[#allocation6 + $0x658] sm:$0xff]
      %v1291 = vld [vmem:[#allocation6 + $0x660] sm:$0xff]
      %v1292 = vld [vmem:[#allocation6 + $0x668] sm:$0xff]
      %v1293 = vld [vmem:[#allocation6 + $0x670] sm:$0xff]
      %v1294 = vld [vmem:[#allocation6 + $0x678] sm:$0xff]
      %v1295 = vld [vmem:[#allocation6 + $0x680] sm:$0xff]
      %v1296 = vld [vmem:[#allocation6 + $0x688] sm:$0xff]
      %v1297 = vld [vmem:[#allocation6 + $0x690] sm:$0xff]
      %v1298 = vld [vmem:[#allocation6 + $0x698] sm:$0xff]
      %v1299 = vld [vmem:[#allocation6 + $0x6a0] sm:$0xff]
      %v1300 = vld [vmem:[#allocation6 + $0x6a8] sm:$0xff]
      %v1301 = vld [vmem:[#allocation6 + $0x6b0] sm:$0xff]
      %v1302 = vld [vmem:[#allocation6 + $0x6b8] sm:$0xff]
      %v1303 = vld [vmem:[#allocation6 + $0x6c0] sm:$0xff]
      %v1304 = vld [vmem:[#allocation6 + $0x6c8] sm:$0xff]
      %v1305 = vld [vmem:[#allocation6 + $0x6d0] sm:$0xff]
      %v1306 = vld [vmem:[#allocation6 + $0x6d8] sm:$0xff]
      %v1307 = vld [vmem:[#allocation6 + $0x6e0] sm:$0xff]
      %v1308 = vld [vmem:[#allocation6 + $0x6e8] sm:$0xff]
      %v1309 = vld [vmem:[#allocation6 + $0x6f0] sm:$0xff]
      %v1310 = vld [vmem:[#allocation6 + $0x6f8] sm:$0xff]
      %v1311 = vld [vmem:[#allocation6 + $0x700] sm:$0xff]
      %v1312 = vld [vmem:[#allocation6 + $0x708] sm:$0xff]
      %v1313 = vld [vmem:[#allocation6 + $0x710] sm:$0xff]
      %v1314 = vld [vmem:[#allocation6 + $0x718] sm:$0xff]
      %v1315 = vld [vmem:[#allocation6 + $0x720] sm:$0xff]
      %v1316 = vld [vmem:[#allocation6 + $0x728] sm:$0xff]
      %v1317 = vld [vmem:[#allocation6 + $0x730] sm:$0xff]
      %v1318 = vld [vmem:[#allocation6 + $0x738] sm:$0xff]
      %v1319 = vld [vmem:[#allocation6 + $0x740] sm:$0xff]
      %v1320 = vld [vmem:[#allocation6 + $0x748] sm:$0xff]
      %v1321 = vld [vmem:[#allocation6 + $0x750] sm:$0xff]
      %v1322 = vld [vmem:[#allocation6 + $0x758] sm:$0xff]
      %v1323 = vld [vmem:[#allocation6 + $0x760] sm:$0xff]
      %v1324 = vld [vmem:[#allocation6 + $0x768] sm:$0xff]
      %v1325 = vld [vmem:[#allocation6 + $0x770] sm:$0xff]
      %v1326 = vld [vmem:[#allocation6 + $0x778] sm:$0xff]
      %v1327 = vld [vmem:[#allocation6 + $0x780] sm:$0xff]
      %v1328 = vld [vmem:[#allocation6 + $0x788] sm:$0xff]
      %v1329 = vld [vmem:[#allocation6 + $0x790] sm:$0xff]
      %v1330 = vld [vmem:[#allocation6 + $0x798] sm:$0xff]
      %v1331 = vld [vmem:[#allocation6 + $0x7a0] sm:$0xff]
      %v1332 = vld [vmem:[#allocation6 + $0x7a8] sm:$0xff]
      %v1333 = vld [vmem:[#allocation6 + $0x7b0] sm:$0xff]
      %v1334 = vld [vmem:[#allocation6 + $0x7b8] sm:$0xff]
      %v1335 = vld [vmem:[#allocation6 + $0x7c0] sm:$0xff]
      %v1336 = vld [vmem:[#allocation6 + $0x7c8] sm:$0xff]
      %v1337 = vld [vmem:[#allocation6 + $0x7d0] sm:$0xff]
      %v1338 = vld [vmem:[#allocation6 + $0x7d8] sm:$0xff]
      %v1339 = vld [vmem:[#allocation6 + $0x7e0] sm:$0xff]
      %v1340 = vld [vmem:[#allocation6 + $0x7e8] sm:$0xff]
      %v1341 = vld [vmem:[#allocation6 + $0x7f0] sm:$0xff]
      %v1342 = vld [vmem:[#allocation6 + $0x7f8] sm:$0xff]
      %v1347 = vcombine.high %v1083, %v1083
      %v1349 = vunpack.c.l.s4 1983009808
      %v1350 = vunpack.c.0.s8 %v1349
      %v1351 = vlaneseq
      %v1352 = vshrl.u32 %v1351, 7
      %v1353 = vsub.s32 %v1350, %v1352
      %v1354 = vrot.slane %v1083, %v1353
      %v1356 = vunpack.c.l.s4 1983009808
      %v1357 = vunpack.c.0.s8 %v1356
      %v1358 = vlaneseq
      %v1359 = vshrl.u32 %v1358, 7
      %v1360 = vsub.s32 %v1357, %v1359
      %v1361 = vrot.slane %v1347, %v1360
      %v1362 = vcombine.high %v1354, %v1354
      %v1363 = vcombine.high %v1361, %v1361
      %v1364 = vcombine.high %v1084, %v1084
      %v1366 = vunpack.c.l.s4 1983009808
      %v1367 = vunpack.c.0.s8 %v1366
      %v1368 = vlaneseq
      %v1369 = vshrl.u32 %v1368, 7
      %v1370 = vsub.s32 %v1367, %v1369
      %v1371 = vrot.slane %v1084, %v1370
      %v1373 = vunpack.c.l.s4 1983009808
      %v1374 = vunpack.c.0.s8 %v1373
      %v1375 = vlaneseq
      %v1376 = vshrl.u32 %v1375, 7
      %v1377 = vsub.s32 %v1374, %v1376
      %v1378 = vrot.slane %v1364, %v1377
      %v1379 = vcombine.high %v1371, %v1371
      %v1380 = vcombine.high %v1378, %v1378
      %v1381 = vcombine.high %v1085, %v1085
      %v1383 = vunpack.c.l.s4 1983009808
      %v1384 = vunpack.c.0.s8 %v1383
      %v1385 = vlaneseq
      %v1386 = vshrl.u32 %v1385, 7
      %v1387 = vsub.s32 %v1384, %v1386
      %v1388 = vrot.slane %v1085, %v1387
      %v1390 = vunpack.c.l.s4 1983009808
      %v1391 = vunpack.c.0.s8 %v1390
      %v1392 = vlaneseq
      %v1393 = vshrl.u32 %v1392, 7
      %v1394 = vsub.s32 %v1391, %v1393
      %v1395 = vrot.slane %v1381, %v1394
      %v1396 = vcombine.high %v1388, %v1388
      %v1397 = vcombine.high %v1395, %v1395
      %v1398 = vcombine.high %v1086, %v1086
      %v1400 = vunpack.c.l.s4 1983009808
      %v1401 = vunpack.c.0.s8 %v1400
      %v1402 = vlaneseq
      %v1403 = vshrl.u32 %v1402, 7
      %v1404 = vsub.s32 %v1401, %v1403
      %v1405 = vrot.slane %v1086, %v1404
      %v1407 = vunpack.c.l.s4 1983009808
      %v1408 = vunpack.c.0.s8 %v1407
      %v1409 = vlaneseq
      %v1410 = vshrl.u32 %v1409, 7
      %v1411 = vsub.s32 %v1408, %v1410
      %v1412 = vrot.slane %v1398, %v1411
      %v1413 = vcombine.high %v1405, %v1405
      %v1414 = vcombine.high %v1412, %v1412
      %1431 = vmatprep.subr.mxu0 0.0
      %1432 = vmatpush1.msra.mxu0 %v1087
      %1433 = vmatprep.subr.mxu0 0.0
      %1434 = vmatpush1.msra.mxu0 %v1088
      %1435 = vmatprep.subr.mxu0 0.0
      %1436 = vmatpush1.msra.mxu0 %v1089
      %1437 = vmatprep.subr.mxu0 0.0
      %1438 = vmatpush1.msra.mxu0 %v1090
      %1439 = vmatprep.subr.mxu0 0.0
      %1440 = vmatpush1.msra.mxu0 %v1091
      %1441 = vmatprep.subr.mxu0 0.0
      %1442 = vmatpush1.msra.mxu0 %v1092
      %1443 = vmatprep.subr.mxu0 0.0
      %1444 = vmatpush1.msra.mxu0 %v1093
      %1445 = vmatprep.subr.mxu0 0.0
      %1446 = vmatpush1.msra.mxu0 %v1094
      %1447 = vmatprep.subr.mxu0 0.0
      %1448 = vmatpush1.msra.mxu0 %v1095
      %1449 = vmatprep.subr.mxu0 0.0
      %1450 = vmatpush1.msra.mxu0 %v1096
      %1451 = vmatprep.subr.mxu0 0.0
      %1452 = vmatpush1.msra.mxu0 %v1097
      %1453 = vmatprep.subr.mxu0 0.0
      %1454 = vmatpush1.msra.mxu0 %v1098
      %1455 = vmatprep.subr.mxu0 0.0
      %1456 = vmatpush1.msra.mxu0 %v1099
      %1457 = vmatprep.subr.mxu0 0.0
      %1458 = vmatpush1.msra.mxu0 %v1100
      %1459 = vmatprep.subr.mxu0 0.0
      %1460 = vmatpush1.msra.mxu0 %v1101
      %1461 = vmatprep.subr.mxu0 0.0
      %1462 = vmatpush1.msra.mxu0 %v1102
      %1463 = vmatprep.subr.mxu0 0.0
      %1464 = vmatpush1.msra.mxu0 %v1103
      %1465 = vmatprep.subr.mxu0 0.0
      %1466 = vmatpush1.msra.mxu0 %v1104
      %1467 = vmatprep.subr.mxu0 0.0
      %1468 = vmatpush1.msra.mxu0 %v1105
      %1469 = vmatprep.subr.mxu0 0.0
      %1470 = vmatpush1.msra.mxu0 %v1106
      %1471 = vmatprep.subr.mxu0 0.0
      %1472 = vmatpush1.msra.mxu0 %v1107
      %1473 = vmatprep.subr.mxu0 0.0
      %1474 = vmatpush1.msra.mxu0 %v1108
      %1475 = vmatprep.subr.mxu0 0.0
      %1476 = vmatpush1.msra.mxu0 %v1109
      %1477 = vmatprep.subr.mxu0 0.0
      %1478 = vmatpush1.msra.mxu0 %v1110
      %1479 = vmatprep.subr.mxu0 0.0
      %1480 = vmatpush1.msra.mxu0 %v1111
      %1481 = vmatprep.subr.mxu0 0.0
      %1482 = vmatpush1.msra.mxu0 %v1112
      %1483 = vmatprep.subr.mxu0 0.0
      %1484 = vmatpush1.msra.mxu0 %v1113
      %1485 = vmatprep.subr.mxu0 0.0
      %1486 = vmatpush1.msra.mxu0 %v1114
      %1487 = vmatprep.subr.mxu0 0.0
      %1488 = vmatpush1.msra.mxu0 %v1115
      %1489 = vmatprep.subr.mxu0 0.0
      %1490 = vmatpush1.msra.mxu0 %v1116
      %1491 = vmatprep.subr.mxu0 0.0
      %1492 = vmatpush1.msra.mxu0 %v1117
      %1493 = vmatprep.subr.mxu0 0.0
      %1494 = vmatpush1.msra.mxu0 %v1118
      %1495 = vmatprep.mubr.f32.mxu0 %v1362
      %1496 = vmatmul.mubr.f32.gmra.mrb[0].mxu0 %v1354
      %v1497 = vpop.f32.mrb[0].mxu0
      %v1498 = vadd.f32 0.0, %v1497
      %v1499 = vpop.f32.mrb[0].mxu0
      %1500 = vdwg.mxu0
      %1501 = vmatprep.subr.mxu0 0.0
      %1502 = vmatpush1.msra.mxu0 %v1119
      %1503 = vmatprep.subr.mxu0 0.0
      %1504 = vmatpush1.msra.mxu0 %v1120
      %1505 = vmatprep.subr.mxu0 0.0
      %1506 = vmatpush1.msra.mxu0 %v1121
      %1507 = vmatprep.subr.mxu0 0.0
      %1508 = vmatpush1.msra.mxu0 %v1122
      %1509 = vmatprep.subr.mxu0 0.0
      %1510 = vmatpush1.msra.mxu0 %v1123
      %1511 = vmatprep.subr.mxu0 0.0
      %1512 = vmatpush1.msra.mxu0 %v1124
      %1513 = vmatprep.subr.mxu0 0.0
      %1514 = vmatpush1.msra.mxu0 %v1125
      %1515 = vmatprep.subr.mxu0 0.0
      %1516 = vmatpush1.msra.mxu0 %v1126
      %1517 = vmatprep.subr.mxu0 0.0
      %1518 = vmatpush1.msra.mxu0 %v1127
      %1519 = vmatprep.subr.mxu0 0.0
      %1520 = vmatpush1.msra.mxu0 %v1128
      %1521 = vmatprep.subr.mxu0 0.0
      %1522 = vmatpush1.msra.mxu0 %v1129
      %1523 = vmatprep.subr.mxu0 0.0
      %1524 = vmatpush1.msra.mxu0 %v1130
      %1525 = vmatprep.subr.mxu0 0.0
      %1526 = vmatpush1.msra.mxu0 %v1131
      %1527 = vmatprep.subr.mxu0 0.0
      %1528 = vmatpush1.msra.mxu0 %v1132
      %1529 = vmatprep.subr.mxu0 0.0
      %1530 = vmatpush1.msra.mxu0 %v1133
      %1531 = vmatprep.subr.mxu0 0.0
      %1532 = vmatpush1.msra.mxu0 %v1134
      %1533 = vmatprep.subr.mxu0 0.0
      %1534 = vmatpush1.msra.mxu0 %v1135
      %1535 = vmatprep.subr.mxu0 0.0
      %1536 = vmatpush1.msra.mxu0 %v1136
      %1537 = vmatprep.subr.mxu0 0.0
      %1538 = vmatpush1.msra.mxu0 %v1137
      %1539 = vmatprep.subr.mxu0 0.0
      %1540 = vmatpush1.msra.mxu0 %v1138
      %1541 = vmatprep.subr.mxu0 0.0
      %1542 = vmatpush1.msra.mxu0 %v1139
      %1543 = vmatprep.subr.mxu0 0.0
      %1544 = vmatpush1.msra.mxu0 %v1140
      %1545 = vmatprep.subr.mxu0 0.0
      %1546 = vmatpush1.msra.mxu0 %v1141
      %1547 = vmatprep.subr.mxu0 0.0
      %1548 = vmatpush1.msra.mxu0 %v1142
      %1549 = vmatprep.subr.mxu0 0.0
      %1550 = vmatpush1.msra.mxu0 %v1143
      %1551 = vmatprep.subr.mxu0 0.0
      %1552 = vmatpush1.msra.mxu0 %v1144
      %1553 = vmatprep.subr.mxu0 0.0
      %1554 = vmatpush1.msra.mxu0 %v1145
      %1555 = vmatprep.subr.mxu0 0.0
      %1556 = vmatpush1.msra.mxu0 %v1146
      %1557 = vmatprep.subr.mxu0 0.0
      %1558 = vmatpush1.msra.mxu0 %v1147
      %1559 = vmatprep.subr.mxu0 0.0
      %1560 = vmatpush1.msra.mxu0 %v1148
      %1561 = vmatprep.subr.mxu0 0.0
      %1562 = vmatpush1.msra.mxu0 %v1149
      %1563 = vmatprep.subr.mxu0 0.0
      %1564 = vmatpush1.msra.mxu0 %v1150
      %1565 = vmatprep.mubr.f32.mxu0 %v1363
      %1566 = vmatmul.mubr.f32.gmra.mrb[0].mxu0 %v1361
      %v1567 = vpop.f32.mrb[0].mxu0
      %v1568 = vadd.f32 %v1498, %v1567
      %v1569 = vpop.f32.mrb[0].mxu0
      %1570 = vdwg.mxu0
      %1571 = vmatprep.subr.mxu0 0.0
      %1572 = vmatpush1.msra.mxu0 %v1151
      %1573 = vmatprep.subr.mxu0 0.0
      %1574 = vmatpush1.msra.mxu0 %v1152
      %1575 = vmatprep.subr.mxu0 0.0
      %1576 = vmatpush1.msra.mxu0 %v1153
      %1577 = vmatprep.subr.mxu0 0.0
      %1578 = vmatpush1.msra.mxu0 %v1154
      %1579 = vmatprep.subr.mxu0 0.0
      %1580 = vmatpush1.msra.mxu0 %v1155
      %1581 = vmatprep.subr.mxu0 0.0
      %1582 = vmatpush1.msra.mxu0 %v1156
      %1583 = vmatprep.subr.mxu0 0.0
      %1584 = vmatpush1.msra.mxu0 %v1157
      %1585 = vmatprep.subr.mxu0 0.0
      %1586 = vmatpush1.msra.mxu0 %v1158
      %1587 = vmatprep.subr.mxu0 0.0
      %1588 = vmatpush1.msra.mxu0 %v1159
      %1589 = vmatprep.subr.mxu0 0.0
      %1590 = vmatpush1.msra.mxu0 %v1160
      %1591 = vmatprep.subr.mxu0 0.0
      %1592 = vmatpush1.msra.mxu0 %v1161
      %1593 = vmatprep.subr.mxu0 0.0
      %1594 = vmatpush1.msra.mxu0 %v1162
      %1595 = vmatprep.subr.mxu0 0.0
      %1596 = vmatpush1.msra.mxu0 %v1163
      %1597 = vmatprep.subr.mxu0 0.0
      %1598 = vmatpush1.msra.mxu0 %v1164
      %1599 = vmatprep.subr.mxu0 0.0
      %1600 = vmatpush1.msra.mxu0 %v1165
      %1601 = vmatprep.subr.mxu0 0.0
      %1602 = vmatpush1.msra.mxu0 %v1166
      %1603 = vmatprep.subr.mxu0 0.0
      %1604 = vmatpush1.msra.mxu0 %v1167
      %1605 = vmatprep.subr.mxu0 0.0
      %1606 = vmatpush1.msra.mxu0 %v1168
      %1607 = vmatprep.subr.mxu0 0.0
      %1608 = vmatpush1.msra.mxu0 %v1169
      %1609 = vmatprep.subr.mxu0 0.0
      %1610 = vmatpush1.msra.mxu0 %v1170
      %1611 = vmatprep.subr.mxu0 0.0
      %1612 = vmatpush1.msra.mxu0 %v1171
      %1613 = vmatprep.subr.mxu0 0.0
      %1614 = vmatpush1.msra.mxu0 %v1172
      %1615 = vmatprep.subr.mxu0 0.0
      %1616 = vmatpush1.msra.mxu0 %v1173
      %1617 = vmatprep.subr.mxu0 0.0
      %1618 = vmatpush1.msra.mxu0 %v1174
      %1619 = vmatprep.subr.mxu0 0.0
      %1620 = vmatpush1.msra.mxu0 %v1175
      %1621 = vmatprep.subr.mxu0 0.0
      %1622 = vmatpush1.msra.mxu0 %v1176
      %1623 = vmatprep.subr.mxu0 0.0
      %1624 = vmatpush1.msra.mxu0 %v1177
      %1625 = vmatprep.subr.mxu0 0.0
      %1626 = vmatpush1.msra.mxu0 %v1178
      %1627 = vmatprep.subr.mxu0 0.0
      %1628 = vmatpush1.msra.mxu0 %v1179
      %1629 = vmatprep.subr.mxu0 0.0
      %1630 = vmatpush1.msra.mxu0 %v1180
      %1631 = vmatprep.subr.mxu0 0.0
      %1632 = vmatpush1.msra.mxu0 %v1181
      %1633 = vmatprep.subr.mxu0 0.0
      %1634 = vmatpush1.msra.mxu0 %v1182
      %1635 = vmatprep.mubr.f32.mxu0 %v1379
      %1636 = vmatmul.mubr.f32.gmra.mrb[0].mxu0 %v1371
      %v1637 = vpop.f32.mrb[0].mxu0
      %v1638 = vadd.f32 %v1568, %v1637
      %v1639 = vpop.f32.mrb[0].mxu0
      %1640 = vdwg.mxu0
      %1641 = vmatprep.subr.mxu0 0.0
      %1642 = vmatpush1.msra.mxu0 %v1183
      %1643 = vmatprep.subr.mxu0 0.0
      %1644 = vmatpush1.msra.mxu0 %v1184
      %1645 = vmatprep.subr.mxu0 0.0
      %1646 = vmatpush1.msra.mxu0 %v1185
      %1647 = vmatprep.subr.mxu0 0.0
      %1648 = vmatpush1.msra.mxu0 %v1186
      %1649 = vmatprep.subr.mxu0 0.0
      %1650 = vmatpush1.msra.mxu0 %v1187
      %1651 = vmatprep.subr.mxu0 0.0
      %1652 = vmatpush1.msra.mxu0 %v1188
      %1653 = vmatprep.subr.mxu0 0.0
      %1654 = vmatpush1.msra.mxu0 %v1189
      %1655 = vmatprep.subr.mxu0 0.0
      %1656 = vmatpush1.msra.mxu0 %v1190
      %1657 = vmatprep.subr.mxu0 0.0
      %1658 = vmatpush1.msra.mxu0 %v1191
      %1659 = vmatprep.subr.mxu0 0.0
      %1660 = vmatpush1.msra.mxu0 %v1192
      %1661 = vmatprep.subr.mxu0 0.0
      %1662 = vmatpush1.msra.mxu0 %v1193
      %1663 = vmatprep.subr.mxu0 0.0
      %1664 = vmatpush1.msra.mxu0 %v1194
      %1665 = vmatprep.subr.mxu0 0.0
      %1666 = vmatpush1.msra.mxu0 %v1195
      %1667 = vmatprep.subr.mxu0 0.0
      %1668 = vmatpush1.msra.mxu0 %v1196
      %1669 = vmatprep.subr.mxu0 0.0
      %1670 = vmatpush1.msra.mxu0 %v1197
      %1671 = vmatprep.subr.mxu0 0.0
      %1672 = vmatpush1.msra.mxu0 %v1198
      %1673 = vmatprep.subr.mxu0 0.0
      %1674 = vmatpush1.msra.mxu0 %v1199
      %1675 = vmatprep.subr.mxu0 0.0
      %1676 = vmatpush1.msra.mxu0 %v1200
      %1677 = vmatprep.subr.mxu0 0.0
      %1678 = vmatpush1.msra.mxu0 %v1201
      %1679 = vmatprep.subr.mxu0 0.0
      %1680 = vmatpush1.msra.mxu0 %v1202
      %1681 = vmatprep.subr.mxu0 0.0
      %1682 = vmatpush1.msra.mxu0 %v1203
      %1683 = vmatprep.subr.mxu0 0.0
      %1684 = vmatpush1.msra.mxu0 %v1204
      %1685 = vmatprep.subr.mxu0 0.0
      %1686 = vmatpush1.msra.mxu0 %v1205
      %1687 = vmatprep.subr.mxu0 0.0
      %1688 = vmatpush1.msra.mxu0 %v1206
      %1689 = vmatprep.subr.mxu0 0.0
      %1690 = vmatpush1.msra.mxu0 %v1207
      %1691 = vmatprep.subr.mxu0 0.0
      %1692 = vmatpush1.msra.mxu0 %v1208
      %1693 = vmatprep.subr.mxu0 0.0
      %1694 = vmatpush1.msra.mxu0 %v1209
      %1695 = vmatprep.subr.mxu0 0.0
      %1696 = vmatpush1.msra.mxu0 %v1210
      %1697 = vmatprep.subr.mxu0 0.0
      %1698 = vmatpush1.msra.mxu0 %v1211
      %1699 = vmatprep.subr.mxu0 0.0
      %1700 = vmatpush1.msra.mxu0 %v1212
      %1701 = vmatprep.subr.mxu0 0.0
      %1702 = vmatpush1.msra.mxu0 %v1213
      %1703 = vmatprep.subr.mxu0 0.0
      %1704 = vmatpush1.msra.mxu0 %v1214
      %1705 = vmatprep.mubr.f32.mxu0 %v1380
      %1706 = vmatmul.mubr.f32.gmra.mrb[0].mxu0 %v1378
      %v1707 = vpop.f32.mrb[0].mxu0
      %v1708 = vadd.f32 %v1638, %v1707
      %v1709 = vpop.f32.mrb[0].mxu0
      %1710 = vdwg.mxu0
      %1711 = vmatprep.subr.mxu0 0.0
      %1712 = vmatpush1.msra.mxu0 %v1215
      %1713 = vmatprep.subr.mxu0 0.0
      %1714 = vmatpush1.msra.mxu0 %v1216
      %1715 = vmatprep.subr.mxu0 0.0
      %1716 = vmatpush1.msra.mxu0 %v1217
      %1717 = vmatprep.subr.mxu0 0.0
      %1718 = vmatpush1.msra.mxu0 %v1218
      %1719 = vmatprep.subr.mxu0 0.0
      %1720 = vmatpush1.msra.mxu0 %v1219
      %1721 = vmatprep.subr.mxu0 0.0
      %1722 = vmatpush1.msra.mxu0 %v1220
      %1723 = vmatprep.subr.mxu0 0.0
      %1724 = vmatpush1.msra.mxu0 %v1221
      %1725 = vmatprep.subr.mxu0 0.0
      %1726 = vmatpush1.msra.mxu0 %v1222
      %1727 = vmatprep.subr.mxu0 0.0
      %1728 = vmatpush1.msra.mxu0 %v1223
      %1729 = vmatprep.subr.mxu0 0.0
      %1730 = vmatpush1.msra.mxu0 %v1224
      %1731 = vmatprep.subr.mxu0 0.0
      %1732 = vmatpush1.msra.mxu0 %v1225
      %1733 = vmatprep.subr.mxu0 0.0
      %1734 = vmatpush1.msra.mxu0 %v1226
      %1735 = vmatprep.subr.mxu0 0.0
      %1736 = vmatpush1.msra.mxu0 %v1227
      %1737 = vmatprep.subr.mxu0 0.0
      %1738 = vmatpush1.msra.mxu0 %v1228
      %1739 = vmatprep.subr.mxu0 0.0
      %1740 = vmatpush1.msra.mxu0 %v1229
      %1741 = vmatprep.subr.mxu0 0.0
      %1742 = vmatpush1.msra.mxu0 %v1230
      %1743 = vmatprep.subr.mxu0 0.0
      %1744 = vmatpush1.msra.mxu0 %v1231
      %1745 = vmatprep.subr.mxu0 0.0
      %1746 = vmatpush1.msra.mxu0 %v1232
      %1747 = vmatprep.subr.mxu0 0.0
      %1748 = vmatpush1.msra.mxu0 %v1233
      %1749 = vmatprep.subr.mxu0 0.0
      %1750 = vmatpush1.msra.mxu0 %v1234
      %1751 = vmatprep.subr.mxu0 0.0
      %1752 = vmatpush1.msra.mxu0 %v1235
      %1753 = vmatprep.subr.mxu0 0.0
      %1754 = vmatpush1.msra.mxu0 %v1236
      %1755 = vmatprep.subr.mxu0 0.0
      %1756 = vmatpush1.msra.mxu0 %v1237
      %1757 = vmatprep.subr.mxu0 0.0
      %1758 = vmatpush1.msra.mxu0 %v1238
      %1759 = vmatprep.subr.mxu0 0.0
      %1760 = vmatpush1.msra.mxu0 %v1239
      %1761 = vmatprep.subr.mxu0 0.0
      %1762 = vmatpush1.msra.mxu0 %v1240
      %1763 = vmatprep.subr.mxu0 0.0
      %1764 = vmatpush1.msra.mxu0 %v1241
      %1765 = vmatprep.subr.mxu0 0.0
      %1766 = vmatpush1.msra.mxu0 %v1242
      %1767 = vmatprep.subr.mxu0 0.0
      %1768 = vmatpush1.msra.mxu0 %v1243
      %1769 = vmatprep.subr.mxu0 0.0
      %1770 = vmatpush1.msra.mxu0 %v1244
      %1771 = vmatprep.subr.mxu0 0.0
      %1772 = vmatpush1.msra.mxu0 %v1245
      %1773 = vmatprep.subr.mxu0 0.0
      %1774 = vmatpush1.msra.mxu0 %v1246
      %1775 = vmatprep.mubr.f32.mxu0 %v1396
      %1776 = vmatmul.mubr.f32.gmra.mrb[0].mxu0 %v1388
      %v1777 = vpop.f32.mrb[0].mxu0
      %v1778 = vadd.f32 %v1708, %v1777
      %v1779 = vpop.f32.mrb[0].mxu0
      %1780 = vdwg.mxu0
      %1781 = vmatprep.subr.mxu0 0.0
      %1782 = vmatpush1.msra.mxu0 %v1247
      %1783 = vmatprep.subr.mxu0 0.0
      %1784 = vmatpush1.msra.mxu0 %v1248
      %1785 = vmatprep.subr.mxu0 0.0
      %1786 = vmatpush1.msra.mxu0 %v1249
      %1787 = vmatprep.subr.mxu0 0.0
      %1788 = vmatpush1.msra.mxu0 %v1250
      %1789 = vmatprep.subr.mxu0 0.0
      %1790 = vmatpush1.msra.mxu0 %v1251
      %1791 = vmatprep.subr.mxu0 0.0
      %1792 = vmatpush1.msra.mxu0 %v1252
      %1793 = vmatprep.subr.mxu0 0.0
      %1794 = vmatpush1.msra.mxu0 %v1253
      %1795 = vmatprep.subr.mxu0 0.0
      %1796 = vmatpush1.msra.mxu0 %v1254
      %1797 = vmatprep.subr.mxu0 0.0
      %1798 = vmatpush1.msra.mxu0 %v1255
      %1799 = vmatprep.subr.mxu0 0.0
      %1800 = vmatpush1.msra.mxu0 %v1256
      %1801 = vmatprep.subr.mxu0 0.0
      %1802 = vmatpush1.msra.mxu0 %v1257
      %1803 = vmatprep.subr.mxu0 0.0
      %1804 = vmatpush1.msra.mxu0 %v1258
      %1805 = vmatprep.subr.mxu0 0.0
      %1806 = vmatpush1.msra.mxu0 %v1259
      %1807 = vmatprep.subr.mxu0 0.0
      %1808 = vmatpush1.msra.mxu0 %v1260
      %1809 = vmatprep.subr.mxu0 0.0
      %1810 = vmatpush1.msra.mxu0 %v1261
      %1811 = vmatprep.subr.mxu0 0.0
      %1812 = vmatpush1.msra.mxu0 %v1262
      %1813 = vmatprep.subr.mxu0 0.0
      %1814 = vmatpush1.msra.mxu0 %v1263
      %1815 = vmatprep.subr.mxu0 0.0
      %1816 = vmatpush1.msra.mxu0 %v1264
      %1817 = vmatprep.subr.mxu0 0.0
      %1818 = vmatpush1.msra.mxu0 %v1265
      %1819 = vmatprep.subr.mxu0 0.0
      %1820 = vmatpush1.msra.mxu0 %v1266
      %1821 = vmatprep.subr.mxu0 0.0
      %1822 = vmatpush1.msra.mxu0 %v1267
      %1823 = vmatprep.subr.mxu0 0.0
      %1824 = vmatpush1.msra.mxu0 %v1268
      %1825 = vmatprep.subr.mxu0 0.0
      %1826 = vmatpush1.msra.mxu0 %v1269
      %1827 = vmatprep.subr.mxu0 0.0
      %1828 = vmatpush1.msra.mxu0 %v1270
      %1829 = vmatprep.subr.mxu0 0.0
      %1830 = vmatpush1.msra.mxu0 %v1271
      %1831 = vmatprep.subr.mxu0 0.0
      %1832 = vmatpush1.msra.mxu0 %v1272
      %1833 = vmatprep.subr.mxu0 0.0
      %1834 = vmatpush1.msra.mxu0 %v1273
      %1835 = vmatprep.subr.mxu0 0.0
      %1836 = vmatpush1.msra.mxu0 %v1274
      %1837 = vmatprep.subr.mxu0 0.0
      %1838 = vmatpush1.msra.mxu0 %v1275
      %1839 = vmatprep.subr.mxu0 0.0
      %1840 = vmatpush1.msra.mxu0 %v1276
      %1841 = vmatprep.subr.mxu0 0.0
      %1842 = vmatpush1.msra.mxu0 %v1277
      %1843 = vmatprep.subr.mxu0 0.0
      %1844 = vmatpush1.msra.mxu0 %v1278
      %1845 = vmatprep.mubr.f32.mxu0 %v1397
      %1846 = vmatmul.mubr.f32.gmra.mrb[0].mxu0 %v1395
      %v1847 = vpop.f32.mrb[0].mxu0
      %v1848 = vadd.f32 %v1778, %v1847
      %v1849 = vpop.f32.mrb[0].mxu0
      %1850 = vdwg.mxu0
      %1851 = vmatprep.subr.mxu0 0.0
      %1852 = vmatpush1.msra.mxu0 %v1279
      %1853 = vmatprep.subr.mxu0 0.0
      %1854 = vmatpush1.msra.mxu0 %v1280
      %1855 = vmatprep.subr.mxu0 0.0
      %1856 = vmatpush1.msra.mxu0 %v1281
      %1857 = vmatprep.subr.mxu0 0.0
      %1858 = vmatpush1.msra.mxu0 %v1282
      %1859 = vmatprep.subr.mxu0 0.0
      %1860 = vmatpush1.msra.mxu0 %v1283
      %1861 = vmatprep.subr.mxu0 0.0
      %1862 = vmatpush1.msra.mxu0 %v1284
      %1863 = vmatprep.subr.mxu0 0.0
      %1864 = vmatpush1.msra.mxu0 %v1285
      %1865 = vmatprep.subr.mxu0 0.0
      %1866 = vmatpush1.msra.mxu0 %v1286
      %1867 = vmatprep.subr.mxu0 0.0
      %1868 = vmatpush1.msra.mxu0 %v1287
      %1869 = vmatprep.subr.mxu0 0.0
      %1870 = vmatpush1.msra.mxu0 %v1288
      %1871 = vmatprep.subr.mxu0 0.0
      %1872 = vmatpush1.msra.mxu0 %v1289
      %1873 = vmatprep.subr.mxu0 0.0
      %1874 = vmatpush1.msra.mxu0 %v1290
      %1875 = vmatprep.subr.mxu0 0.0
      %1876 = vmatpush1.msra.mxu0 %v1291
      %1877 = vmatprep.subr.mxu0 0.0
      %1878 = vmatpush1.msra.mxu0 %v1292
      %1879 = vmatprep.subr.mxu0 0.0
      %1880 = vmatpush1.msra.mxu0 %v1293
      %1881 = vmatprep.subr.mxu0 0.0
      %1882 = vmatpush1.msra.mxu0 %v1294
      %1883 = vmatprep.subr.mxu0 0.0
      %1884 = vmatpush1.msra.mxu0 %v1295
      %1885 = vmatprep.subr.mxu0 0.0
      %1886 = vmatpush1.msra.mxu0 %v1296
      %1887 = vmatprep.subr.mxu0 0.0
      %1888 = vmatpush1.msra.mxu0 %v1297
      %1889 = vmatprep.subr.mxu0 0.0
      %1890 = vmatpush1.msra.mxu0 %v1298
      %1891 = vmatprep.subr.mxu0 0.0
      %1892 = vmatpush1.msra.mxu0 %v1299
      %1893 = vmatprep.subr.mxu0 0.0
      %1894 = vmatpush1.msra.mxu0 %v1300
      %1895 = vmatprep.subr.mxu0 0.0
      %1896 = vmatpush1.msra.mxu0 %v1301
      %1897 = vmatprep.subr.mxu0 0.0
      %1898 = vmatpush1.msra.mxu0 %v1302
      %1899 = vmatprep.subr.mxu0 0.0
      %1900 = vmatpush1.msra.mxu0 %v1303
      %1901 = vmatprep.subr.mxu0 0.0
      %1902 = vmatpush1.msra.mxu0 %v1304
      %1903 = vmatprep.subr.mxu0 0.0
      %1904 = vmatpush1.msra.mxu0 %v1305
      %1905 = vmatprep.subr.mxu0 0.0
      %1906 = vmatpush1.msra.mxu0 %v1306
      %1907 = vmatprep.subr.mxu0 0.0
      %1908 = vmatpush1.msra.mxu0 %v1307
      %1909 = vmatprep.subr.mxu0 0.0
      %1910 = vmatpush1.msra.mxu0 %v1308
      %1911 = vmatprep.subr.mxu0 0.0
      %1912 = vmatpush1.msra.mxu0 %v1309
      %1913 = vmatprep.subr.mxu0 0.0
      %1914 = vmatpush1.msra.mxu0 %v1310
      %1915 = vmatprep.mubr.f32.mxu0 %v1413
      %1916 = vmatmul.mubr.f32.gmra.mrb[0].mxu0 %v1405
      %v1917 = vpop.f32.mrb[0].mxu0
      %v1918 = vadd.f32 %v1848, %v1917
      %v1919 = vpop.f32.mrb[0].mxu0
      %1920 = vdwg.mxu0
      %1921 = vmatprep.subr.mxu0 0.0
      %1922 = vmatpush1.msra.mxu0 %v1311
      %1923 = vmatprep.subr.mxu0 0.0
      %1924 = vmatpush1.msra.mxu0 %v1312
      %1925 = vmatprep.subr.mxu0 0.0
      %1926 = vmatpush1.msra.mxu0 %v1313
      %1927 = vmatprep.subr.mxu0 0.0
      %1928 = vmatpush1.msra.mxu0 %v1314
      %1929 = vmatprep.subr.mxu0 0.0
      %1930 = vmatpush1.msra.mxu0 %v1315
      %1931 = vmatprep.subr.mxu0 0.0
      %1932 = vmatpush1.msra.mxu0 %v1316
      %1933 = vmatprep.subr.mxu0 0.0
      %1934 = vmatpush1.msra.mxu0 %v1317
      %1935 = vmatprep.subr.mxu0 0.0
      %1936 = vmatpush1.msra.mxu0 %v1318
      %1937 = vmatprep.subr.mxu0 0.0
      %1938 = vmatpush1.msra.mxu0 %v1319
      %1939 = vmatprep.subr.mxu0 0.0
      %1940 = vmatpush1.msra.mxu0 %v1320
      %1941 = vmatprep.subr.mxu0 0.0
      %1942 = vmatpush1.msra.mxu0 %v1321
      %1943 = vmatprep.subr.mxu0 0.0
      %1944 = vmatpush1.msra.mxu0 %v1322
      %1945 = vmatprep.subr.mxu0 0.0
      %1946 = vmatpush1.msra.mxu0 %v1323
      %1947 = vmatprep.subr.mxu0 0.0
      %1948 = vmatpush1.msra.mxu0 %v1324
      %1949 = vmatprep.subr.mxu0 0.0
      %1950 = vmatpush1.msra.mxu0 %v1325
      %1951 = vmatprep.subr.mxu0 0.0
      %1952 = vmatpush1.msra.mxu0 %v1326
      %1953 = vmatprep.subr.mxu0 0.0
      %1954 = vmatpush1.msra.mxu0 %v1327
      %1955 = vmatprep.subr.mxu0 0.0
      %1956 = vmatpush1.msra.mxu0 %v1328
      %1957 = vmatprep.subr.mxu0 0.0
      %1958 = vmatpush1.msra.mxu0 %v1329
      %1959 = vmatprep.subr.mxu0 0.0
      %1960 = vmatpush1.msra.mxu0 %v1330
      %1961 = vmatprep.subr.mxu0 0.0
      %1962 = vmatpush1.msra.mxu0 %v1331
      %1963 = vmatprep.subr.mxu0 0.0
      %1964 = vmatpush1.msra.mxu0 %v1332
      %1965 = vmatprep.subr.mxu0 0.0
      %1966 = vmatpush1.msra.mxu0 %v1333
      %1967 = vmatprep.subr.mxu0 0.0
      %1968 = vmatpush1.msra.mxu0 %v1334
      %1969 = vmatprep.subr.mxu0 0.0
      %1970 = vmatpush1.msra.mxu0 %v1335
      %1971 = vmatprep.subr.mxu0 0.0
      %1972 = vmatpush1.msra.mxu0 %v1336
      %1973 = vmatprep.subr.mxu0 0.0
      %1974 = vmatpush1.msra.mxu0 %v1337
      %1975 = vmatprep.subr.mxu0 0.0
      %1976 = vmatpush1.msra.mxu0 %v1338
      %1977 = vmatprep.subr.mxu0 0.0
      %1978 = vmatpush1.msra.mxu0 %v1339
      %1979 = vmatprep.subr.mxu0 0.0
      %1980 = vmatpush1.msra.mxu0 %v1340
      %1981 = vmatprep.subr.mxu0 0.0
      %1982 = vmatpush1.msra.mxu0 %v1341
      %1983 = vmatprep.subr.mxu0 0.0
      %1984 = vmatpush1.msra.mxu0 %v1342
      %1985 = vmatprep.mubr.f32.mxu0 %v1414
      %1986 = vmatmul.mubr.f32.gmra.mrb[0].mxu0 %v1412
      %v1987 = vpop.f32.mrb[0].mxu0
      %v1988 = vadd.f32 %v1918, %v1987
      %v1989 = vpop.f32.mrb[0].mxu0
      %1990 = vdwg.mxu0
      %v1991 = vmul.f32 %v1988, 0.015625
      %v1992 = vld [vmem:[#allocation8] sm:$0x1]
      %v1994 = vlaneseq
      %v1995 = vshrl.u32 %v1994, 7
      %v1996 = vsub.s32 0, %v1995
      %v1997 = vrot.slane %v1992, %v1996
      %v1999 = vadd.f32 %v1991, %v1997
      %2000 = vst [vmem:[#allocation9] sm:$0x3] %v1999
    $region33: #{tpu_custom_call.1} parent=1 // pred_fallthru
      _
    // Predicated region
    $region34: #{tpu_custom_call.1} parent=1 // pred_check
      _
    $region35: #{tpu_custom_call.1} parent=1 // pred_check_branch
      %2002 = sbr.rel (0) target = $region37
    $region36: #{tpu_custom_call.1} parent=1 // pred_region
      %s2004 = ssub.s32 32, 32
      %2005 = vsyncadd [#allocation5], %s2004
      %s2007 = sshll.u32 [#allocation9], 4
      %s2008 = int_to_ptr.vmem [resolvable:$true] %s2007
      %2010 = dma.vmem_to_hbm [thread:$0]  %s2008, 32, %s3, [#allocation5]
    $region37: #{tpu_custom_call.1} parent=1 // pred_fallthru
      _
    // Predicated region
    $region38: #{tpu_custom_call.1} parent=1 // pred_check
      _
    $region39: #{tpu_custom_call.1} parent=1 // pred_check_branch
      %2012 = sbr.rel (0) target = $region41
    $region40: #{tpu_custom_call.1} parent=1 // pred_region
      %2013 = dma.done [#allocation5], 32
    $region41: #{tpu_custom_call.1} parent=1 // pred_fallthru
      _
    %2014 = vsyncpa [#allocation4], 1
    %2015 = vsyncpa [#allocation7], 1
    %2016 = vsyncpa [#allocation5], 1

</llo_original>
